<compile_context>
chip_gen: v6e
topology: v6e:2x2x1
jax: 0.10.0
libtpu: 0.0.40
codegen_flags: <defaults>
</compile_context>

<pallas_src>
import functools

import jax
import jax.numpy as jnp
from jax.experimental import pallas as pl
from jax.experimental.pallas import tpu as pltpu

# Autoencoder layer widths (mirrors the PyTorch module's __init__)
ENC_DIMS = [128, 64, 32, 16]
DEC_DIMS = [32, 64, 128]  # final decoder layer goes back to input_dim

# torch Sequential (8 Linear layers):
#   encoder: L(D,128)+ReLU, L(128,64)+ReLU, L(64,32)+ReLU, L(32,16)
#   decoder: L(16,32)+ReLU, L(32,64)+ReLU, L(64,128)+ReLU, L(128,D)
RELU_FLAGS_8 = (True, True, True, False, True, True, True, False)

_VMEM_TILE_BUDGET = 32 * 1024 * 1024   # conservative working-set target
_VMEM_LIMIT_BYTES = 48 * 1024 * 1024   # scoped VMEM limit (fits v7x 64 MiB)


def _round_up(x, m):
    return ((x + m - 1) // m) * m


def _autoencoder_kernel(x_ref, *refs):
    """Fused 7-matmul chain (layer pair 4/5 pre-folded), VMEM-resident per tile.

    refs = (w0, b0, w1, b1, ..., w6, b6, out_ref).  Weights arrive pre-cast to
    bf16; activations are cast to bf16 only at the MXU inputs, accumulation /
    bias / ReLU are f32.
    """
    out_ref = refs[-1]
    param_refs = refs[:-1]
    n_layers = len(param_refs) // 2

    h = x_ref[...].astype(jnp.float32)
    for i in range(n_layers):
        w = param_refs[2 * i][...]          # bf16 (in, out)
        b = param_refs[2 * i + 1][...]      # f32  (1, out)
        acc = jnp.dot(h.astype(jnp.bfloat16), w,
                      preferred_element_type=jnp.float32)
        h = acc + b
        if i < n_layers - 1:                # ReLU on every layer but the last
            h = jnp.maximum(h, 0.0)
    out_ref[...] = h.astype(out_ref.dtype)


def _prepare_params(params):
    """Fuse the ReLU-free 32->16->32 layer pair and cast weights to bf16.

    params: flat [w0, b0, ..., w7, b7] with w (in, out) f32, b (1, out) f32.
    Returns a flat list of 7 (w_bf16, b_f32) pairs.
    """
    ws = [params[2 * i] for i in range(8)]
    bs = [params[2 * i + 1].reshape(1, -1).astype(jnp.float32) for i in range(8)]

    # Layer 3 (32->16, no ReLU) followed by layer 4 (16->32): fold into one
    # 32->32 layer.  Same math (composition done in f32, then cast to bf16).
    w34 = ws[3] @ ws[4]
    b34 = bs[3] @ ws[4] + bs[4]
    ws = ws[:3] + [w34] + ws[5:]
    bs = bs[:3] + [b34] + bs[5:]

    prepared = []
    for w, b in zip(ws, bs):
        prepared.append(w.astype(jnp.bfloat16))
        prepared.append(b)
    return prepared


def _pick_batch_tile(batch, input_dim, block_batch):
    """VMEM-budgeted batch tile; >= 2 grid steps when the batch permits."""
    if batch <= 8:
        return batch  # full-extent batch block (allowed by the (8,128) rule)
    # Per-row cost: double-buffered f32 x + out tiles (2 arrays x 2 buffers)
    # plus ~3 live f32 activation temps up to 128 lanes wide.
    per_row = 4 * input_dim * 4 + 3 * 128 * 4
    # First/last-layer bf16 weights (double-buffered) + misc headroom.
    fixed = 2 * (input_dim * 128 * 2) * 2 + (1 << 20)
    tb = max(8, (_VMEM_TILE_BUDGET - fixed) // per_row)
    tb = min(tb, block_batch, _round_up(batch, 8))
    if batch >= 16:
        # Cap at ~half the batch so the "parallel" grid axis has >= 2 steps
        # (keeps both v7x TensorCores busy; harmless on v5e/v6e).
        tb = min(tb, _round_up(-(-batch // 2), 8))
    return max(8, (tb // 8) * 8)


@functools.partial(jax.jit, static_argnames=("block_batch",))
def autoencoder_forward(x, params, *, block_batch=1024):
    """x: (B, input_dim). params: flat list [w1, b1, ..., w8, b8] (f32)."""
    batch, input_dim = x.shape

    prepared = _prepare_params(params)
    tb = _pick_batch_tile(batch, input_dim, block_batch)
    grid = (pl.cdiv(batch, tb),)   # ragged boundary block is masked by Pallas

    vmem = pltpu.MemorySpace.VMEM
    x_spec = pl.BlockSpec((tb, input_dim), lambda i: (i, 0), memory_space=vmem)
    out_spec = pl.BlockSpec((tb, input_dim), lambda i: (i, 0), memory_space=vmem)
    # Weights / biases: full-extent blocks, replicated across the batch grid
    # (index_map -> (0, 0)) so they are DMA'd once and stay VMEM-resident.
    param_specs = [
        pl.BlockSpec(p.shape, lambda i: (0, 0), memory_space=vmem)
        for p in prepared
    ]

    n_layers = len(prepared) // 2
    layer_dims = [tuple(prepared[2 * i].shape) for i in range(n_layers)]
    flops = 2 * batch * sum(a * b for a, b in layer_dims)
    bytes_accessed = (
        2 * batch * input_dim * x.dtype.itemsize      # x in + out
        + sum(a * b * 2 for a, b in layer_dims)        # bf16 weights
        + sum(b * 4 for _, b in layer_dims)            # f32 biases
    )

    return pl.pallas_call(
        _autoencoder_kernel,
        out_shape=jax.ShapeDtypeStruct((batch, input_dim), x.dtype),
        grid=grid,
        in_specs=[x_spec] + param_specs,
        out_specs=out_spec,
        compiler_params=pltpu.CompilerParams(
            dimension_semantics=("parallel",),
            vmem_limit_bytes=_VMEM_LIMIT_BYTES,
        ),
        cost_estimate=pl.CostEstimate(
            flops=flops, transcendentals=0, bytes_accessed=bytes_accessed),
    )(x, *prepared)


def init_params(key, input_dim):
    """Deterministic init mimicking torch.nn.Linear defaults (U(-k,k), k=1/sqrt(fan_in))."""
    dims = [input_dim] + ENC_DIMS + DEC_DIMS + [input_dim]
    params = []
    for i in range(len(dims) - 1):
        fan_in, fan_out = dims[i], dims[i + 1]
        key, kw, kb = jax.random.split(key, 3)
        bound = 1.0 / (fan_in ** 0.5)
        w = jax.random.uniform(kw, (fan_in, fan_out), jnp.float32, -bound, bound)
        b = jax.random.uniform(kb, (1, fan_out), jnp.float32, -bound, bound)
        params.append(w)
        params.append(b)
    return params


def reference_forward_matched(x, params):
    """Pure-JAX reference with the SAME arithmetic as the kernel
    (fused 32->16->32 pair, bf16 matmul inputs, f32 accumulation)."""
    prepared = _prepare_params(params)
    n_layers = len(prepared) // 2
    h = x.astype(jnp.float32)
    for i in range(n_layers):
        w = prepared[2 * i]
        b = prepared[2 * i + 1]
        h = jnp.dot(h.astype(jnp.bfloat16), w,
                    preferred_element_type=jnp.float32) + b
        if i < n_layers - 1:
            h = jnp.maximum(h, 0.0)
    return h


def reference_forward_f32(x, params):
    """All-f32, unfused 8-layer reference (true PyTorch semantics)."""
    h = x.astype(jnp.float32)
    for i in range(8):
        w = params[2 * i]
        b = params[2 * i + 1]
        h = jnp.dot(h, w, preferred_element_type=jnp.float32) + b
        if RELU_FLAGS_8[i]:
            h = jnp.maximum(h, 0.0)
    return h


if __name__ == "__main__":
    key = jax.random.PRNGKey(0)
    key, kx = jax.random.split(key)

    batch = 256
    input_dim = 64  # exercises the non-multiple-of-128 lane path directly
    x = jax.random.normal(kx, (batch, input_dim), jnp.float32)
    params = init_params(key, input_dim)

    out = autoencoder_forward(x, params)   # tb=128 -> 2 grid steps
    out = jax.block_until_ready(out)
    assert out.shape == (batch, input_dim)

    # Tight check: kernel vs reference using identical (fused, bf16-input)
    # arithmetic.
    ref = reference_forward_matched(x, params)
    assert jnp.allclose(out, ref, atol=1e-3, rtol=1e-3), "mismatch vs matched reference"

    # Loose check: kernel vs true f32 PyTorch semantics (documents the bf16
    # matmul-input tolerance contract).
    ref_f32 = reference_forward_f32(x, params)
    assert jnp.allclose(out, ref_f32, atol=5e-2, rtol=5e-2), "mismatch vs f32 reference"

    print("KERNEL_OK")
</pallas_src>

<mosaic_0001>
module attributes {stable_mosaic.version = 11 : i64} {
  func.func @_autoencoder_kernel(%arg0: i32, %arg1: memref<128x64xf32, #tpu.memory_space<vmem>>, %arg2: memref<64x128xbf16, #tpu.memory_space<vmem>>, %arg3: memref<1x128xf32, #tpu.memory_space<vmem>>, %arg4: memref<128x64xbf16, #tpu.memory_space<vmem>>, %arg5: memref<1x64xf32, #tpu.memory_space<vmem>>, %arg6: memref<64x32xbf16, #tpu.memory_space<vmem>>, %arg7: memref<1x32xf32, #tpu.memory_space<vmem>>, %arg8: memref<32x32xbf16, #tpu.memory_space<vmem>>, %arg9: memref<1x32xf32, #tpu.memory_space<vmem>>, %arg10: memref<32x64xbf16, #tpu.memory_space<vmem>>, %arg11: memref<1x64xf32, #tpu.memory_space<vmem>>, %arg12: memref<64x128xbf16, #tpu.memory_space<vmem>>, %arg13: memref<1x128xf32, #tpu.memory_space<vmem>>, %arg14: memref<128x64xbf16, #tpu.memory_space<vmem>>, %arg15: memref<1x64xf32, #tpu.memory_space<vmem>>, %arg16: memref<128x64xf32, #tpu.memory_space<vmem>>) attributes {dimension_semantics = [#tpu.dimension_semantics<parallel>], iteration_bounds = array<i64: 2>, scalar_prefetch = 0 : i64, scratch_operands = 0 : i64, tpu.core_type = #tpu.core_type<tc>, window_params = [{transform_indices = @transform_0, window_bounds = array<i64: 128, 64>}, {pipeline_mode = #tpu.pipeline_mode<synchronous>, transform_indices = @transform_1, window_bounds = array<i64: 64, 128>}, {pipeline_mode = #tpu.pipeline_mode<synchronous>, transform_indices = @transform_2, window_bounds = array<i64: 1, 128>}, {pipeline_mode = #tpu.pipeline_mode<synchronous>, transform_indices = @transform_3, window_bounds = array<i64: 128, 64>}, {pipeline_mode = #tpu.pipeline_mode<synchronous>, transform_indices = @transform_4, window_bounds = array<i64: 1, 64>}, {pipeline_mode = #tpu.pipeline_mode<synchronous>, transform_indices = @transform_5, window_bounds = array<i64: 64, 32>}, {pipeline_mode = #tpu.pipeline_mode<synchronous>, transform_indices = @transform_6, window_bounds = array<i64: 1, 32>}, {pipeline_mode = #tpu.pipeline_mode<synchronous>, transform_indices = @transform_7, window_bounds = array<i64: 32, 32>}, {pipeline_mode = #tpu.pipeline_mode<synchronous>, transform_indices = @transform_8, window_bounds = array<i64: 1, 32>}, {pipeline_mode = #tpu.pipeline_mode<synchronous>, transform_indices = @transform_9, window_bounds = array<i64: 32, 64>}, {pipeline_mode = #tpu.pipeline_mode<synchronous>, transform_indices = @transform_10, window_bounds = array<i64: 1, 64>}, {pipeline_mode = #tpu.pipeline_mode<synchronous>, transform_indices = @transform_11, window_bounds = array<i64: 64, 128>}, {pipeline_mode = #tpu.pipeline_mode<synchronous>, transform_indices = @transform_12, window_bounds = array<i64: 1, 128>}, {pipeline_mode = #tpu.pipeline_mode<synchronous>, transform_indices = @transform_13, window_bounds = array<i64: 128, 64>}, {pipeline_mode = #tpu.pipeline_mode<synchronous>, transform_indices = @transform_14, window_bounds = array<i64: 1, 64>}, {transform_indices = @transform_15, window_bounds = array<i64: 128, 64>}]} {
    %c0 = arith.constant 0 : index
    %c0_0 = arith.constant 0 : index
    %0 = vector.load %arg1[%c0, %c0_0] : memref<128x64xf32, #tpu.memory_space<vmem>>, vector<128x64xf32>
    %c0_1 = arith.constant 0 : index
    %c0_2 = arith.constant 0 : index
    %1 = vector.load %arg2[%c0_1, %c0_2] : memref<64x128xbf16, #tpu.memory_space<vmem>>, vector<64x128xbf16>
    %c0_3 = arith.constant 0 : index
    %c0_4 = arith.constant 0 : index
    %2 = vector.load %arg3[%c0_3, %c0_4] : memref<1x128xf32, #tpu.memory_space<vmem>>, vector<1x128xf32>
    %3 = arith.truncf %0 : vector<128x64xf32> to vector<128x64xbf16>
    %cst = arith.constant dense<0.000000e+00> : vector<128x128xf32>
    %4 = tpu.matmul %3, %1, %cst {dimension_numbers = #tpu.dot_dimension_numbers<[1], [0], [0], [1], [0, 0, 1, 1], [], []>} : vector<128x64xbf16>, vector<64x128xbf16>, vector<128x128xf32> -> vector<128x128xf32>
    %5 = vector.broadcast %2 : vector<1x128xf32> to vector<128x128xf32>
    %6 = arith.addf %4, %5 : vector<128x128xf32>
    %cst_5 = arith.constant 0.000000e+00 : f32
    %7 = vector.broadcast %cst_5 : f32 to vector<128x128xf32>
    %8 = arith.maximumf %6, %7 : vector<128x128xf32>
    %c0_6 = arith.constant 0 : index
    %c0_7 = arith.constant 0 : index
    %9 = vector.load %arg4[%c0_6, %c0_7] : memref<128x64xbf16, #tpu.memory_space<vmem>>, vector<128x64xbf16>
    %c0_8 = arith.constant 0 : index
    %c0_9 = arith.constant 0 : index
    %10 = vector.load %arg5[%c0_8, %c0_9] : memref<1x64xf32, #tpu.memory_space<vmem>>, vector<1x64xf32>
    %11 = arith.truncf %8 : vector<128x128xf32> to vector<128x128xbf16>
    %cst_10 = arith.constant dense<0.000000e+00> : vector<128x64xf32>
    %12 = tpu.matmul %11, %9, %cst_10 {dimension_numbers = #tpu.dot_dimension_numbers<[1], [0], [0], [1], [0, 0, 1, 1], [], []>} : vector<128x128xbf16>, vector<128x64xbf16>, vector<128x64xf32> -> vector<128x64xf32>
    %13 = vector.broadcast %10 : vector<1x64xf32> to vector<128x64xf32>
    %14 = arith.addf %12, %13 : vector<128x64xf32>
    %cst_11 = arith.constant 0.000000e+00 : f32
    %15 = vector.broadcast %cst_11 : f32 to vector<128x64xf32>
    %16 = arith.maximumf %14, %15 : vector<128x64xf32>
    %c0_12 = arith.constant 0 : index
    %c0_13 = arith.constant 0 : index
    %17 = vector.load %arg6[%c0_12, %c0_13] : memref<64x32xbf16, #tpu.memory_space<vmem>>, vector<64x32xbf16>
    %c0_14 = arith.constant 0 : index
    %c0_15 = arith.constant 0 : index
    %18 = vector.load %arg7[%c0_14, %c0_15] : memref<1x32xf32, #tpu.memory_space<vmem>>, vector<1x32xf32>
    %19 = arith.truncf %16 : vector<128x64xf32> to vector<128x64xbf16>
    %cst_16 = arith.constant dense<0.000000e+00> : vector<128x32xf32>
    %20 = tpu.matmul %19, %17, %cst_16 {dimension_numbers = #tpu.dot_dimension_numbers<[1], [0], [0], [1], [0, 0, 1, 1], [], []>} : vector<128x64xbf16>, vector<64x32xbf16>, vector<128x32xf32> -> vector<128x32xf32>
    %21 = vector.broadcast %18 : vector<1x32xf32> to vector<128x32xf32>
    %22 = arith.addf %20, %21 : vector<128x32xf32>
    %cst_17 = arith.constant 0.000000e+00 : f32
    %23 = vector.broadcast %cst_17 : f32 to vector<128x32xf32>
    %24 = arith.maximumf %22, %23 : vector<128x32xf32>
    %c0_18 = arith.constant 0 : index
    %c0_19 = arith.constant 0 : index
    %25 = vector.load %arg8[%c0_18, %c0_19] : memref<32x32xbf16, #tpu.memory_space<vmem>>, vector<32x32xbf16>
    %c0_20 = arith.constant 0 : index
    %c0_21 = arith.constant 0 : index
    %26 = vector.load %arg9[%c0_20, %c0_21] : memref<1x32xf32, #tpu.memory_space<vmem>>, vector<1x32xf32>
    %27 = arith.truncf %24 : vector<128x32xf32> to vector<128x32xbf16>
    %cst_22 = arith.constant dense<0.000000e+00> : vector<128x32xf32>
    %28 = tpu.matmul %27, %25, %cst_22 {dimension_numbers = #tpu.dot_dimension_numbers<[1], [0], [0], [1], [0, 0, 1, 1], [], []>} : vector<128x32xbf16>, vector<32x32xbf16>, vector<128x32xf32> -> vector<128x32xf32>
    %29 = vector.broadcast %26 : vector<1x32xf32> to vector<128x32xf32>
    %30 = arith.addf %28, %29 : vector<128x32xf32>
    %cst_23 = arith.constant 0.000000e+00 : f32
    %31 = vector.broadcast %cst_23 : f32 to vector<128x32xf32>
    %32 = arith.maximumf %30, %31 : vector<128x32xf32>
    %c0_24 = arith.constant 0 : index
    %c0_25 = arith.constant 0 : index
    %33 = vector.load %arg10[%c0_24, %c0_25] : memref<32x64xbf16, #tpu.memory_space<vmem>>, vector<32x64xbf16>
    %c0_26 = arith.constant 0 : index
    %c0_27 = arith.constant 0 : index
    %34 = vector.load %arg11[%c0_26, %c0_27] : memref<1x64xf32, #tpu.memory_space<vmem>>, vector<1x64xf32>
    %35 = arith.truncf %32 : vector<128x32xf32> to vector<128x32xbf16>
    %cst_28 = arith.constant dense<0.000000e+00> : vector<128x64xf32>
    %36 = tpu.matmul %35, %33, %cst_28 {dimension_numbers = #tpu.dot_dimension_numbers<[1], [0], [0], [1], [0, 0, 1, 1], [], []>} : vector<128x32xbf16>, vector<32x64xbf16>, vector<128x64xf32> -> vector<128x64xf32>
    %37 = vector.broadcast %34 : vector<1x64xf32> to vector<128x64xf32>
    %38 = arith.addf %36, %37 : vector<128x64xf32>
    %cst_29 = arith.constant 0.000000e+00 : f32
    %39 = vector.broadcast %cst_29 : f32 to vector<128x64xf32>
    %40 = arith.maximumf %38, %39 : vector<128x64xf32>
    %c0_30 = arith.constant 0 : index
    %c0_31 = arith.constant 0 : index
    %41 = vector.load %arg12[%c0_30, %c0_31] : memref<64x128xbf16, #tpu.memory_space<vmem>>, vector<64x128xbf16>
    %c0_32 = arith.constant 0 : index
    %c0_33 = arith.constant 0 : index
    %42 = vector.load %arg13[%c0_32, %c0_33] : memref<1x128xf32, #tpu.memory_space<vmem>>, vector<1x128xf32>
    %43 = arith.truncf %40 : vector<128x64xf32> to vector<128x64xbf16>
    %cst_34 = arith.constant dense<0.000000e+00> : vector<128x128xf32>
    %44 = tpu.matmul %43, %41, %cst_34 {dimension_numbers = #tpu.dot_dimension_numbers<[1], [0], [0], [1], [0, 0, 1, 1], [], []>} : vector<128x64xbf16>, vector<64x128xbf16>, vector<128x128xf32> -> vector<128x128xf32>
    %45 = vector.broadcast %42 : vector<1x128xf32> to vector<128x128xf32>
    %46 = arith.addf %44, %45 : vector<128x128xf32>
    %cst_35 = arith.constant 0.000000e+00 : f32
    %47 = vector.broadcast %cst_35 : f32 to vector<128x128xf32>
    %48 = arith.maximumf %46, %47 : vector<128x128xf32>
    %c0_36 = arith.constant 0 : index
    %c0_37 = arith.constant 0 : index
    %49 = vector.load %arg14[%c0_36, %c0_37] : memref<128x64xbf16, #tpu.memory_space<vmem>>, vector<128x64xbf16>
    %c0_38 = arith.constant 0 : index
    %c0_39 = arith.constant 0 : index
    %50 = vector.load %arg15[%c0_38, %c0_39] : memref<1x64xf32, #tpu.memory_space<vmem>>, vector<1x64xf32>
    %51 = arith.truncf %48 : vector<128x128xf32> to vector<128x128xbf16>
    %cst_40 = arith.constant dense<0.000000e+00> : vector<128x64xf32>
    %52 = tpu.matmul %51, %49, %cst_40 {dimension_numbers = #tpu.dot_dimension_numbers<[1], [0], [0], [1], [0, 0, 1, 1], [], []>} : vector<128x128xbf16>, vector<128x64xbf16>, vector<128x64xf32> -> vector<128x64xf32>
    %53 = vector.broadcast %50 : vector<1x64xf32> to vector<128x64xf32>
    %54 = arith.addf %52, %53 : vector<128x64xf32>
    %c0_41 = arith.constant 0 : index
    %c0_42 = arith.constant 0 : index
    %55 = vector.load %arg16[%c0_41, %c0_42] : memref<128x64xf32, #tpu.memory_space<vmem>>, vector<128x64xf32>
    tpu.vector_store %arg16[%c0_41, %c0_42], %54 {strides = array<i32>} : memref<128x64xf32, #tpu.memory_space<vmem>>, vector<128x64xf32>,
    return
  }
  func.func @transform_0(%arg0: i32) -> (i32, i32) {
    %c0_i32 = arith.constant 0 : i32
    %c0_i32_0 = arith.constant 0 : i32
    return %arg0, %c0_i32 : i32, i32
  }
  func.func @transform_1(%arg0: i32) -> (i32, i32) {
    %c0_i32 = arith.constant 0 : i32
    %c0_i32_0 = arith.constant 0 : i32
    %c0_i32_1 = arith.constant 0 : i32
    return %c0_i32, %c0_i32_0 : i32, i32
  }
  func.func @transform_2(%arg0: i32) -> (i32, i32) {
    %c0_i32 = arith.constant 0 : i32
    %c0_i32_0 = arith.constant 0 : i32
    %c0_i32_1 = arith.constant 0 : i32
    return %c0_i32, %c0_i32_0 : i32, i32
  }
  func.func @transform_3(%arg0: i32) -> (i32, i32) {
    %c0_i32 = arith.constant 0 : i32
    %c0_i32_0 = arith.constant 0 : i32
    %c0_i32_1 = arith.constant 0 : i32
    return %c0_i32, %c0_i32_0 : i32, i32
  }
  func.func @transform_4(%arg0: i32) -> (i32, i32) {
    %c0_i32 = arith.constant 0 : i32
    %c0_i32_0 = arith.constant 0 : i32
    %c0_i32_1 = arith.constant 0 : i32
    return %c0_i32, %c0_i32_0 : i32, i32
  }
  func.func @transform_5(%arg0: i32) -> (i32, i32) {
    %c0_i32 = arith.constant 0 : i32
    %c0_i32_0 = arith.constant 0 : i32
    %c0_i32_1 = arith.constant 0 : i32
    return %c0_i32, %c0_i32_0 : i32, i32
  }
  func.func @transform_6(%arg0: i32) -> (i32, i32) {
    %c0_i32 = arith.constant 0 : i32
    %c0_i32_0 = arith.constant 0 : i32
    %c0_i32_1 = arith.constant 0 : i32
    return %c0_i32, %c0_i32_0 : i32, i32
  }
  func.func @transform_7(%arg0: i32) -> (i32, i32) {
    %c0_i32 = arith.constant 0 : i32
    %c0_i32_0 = arith.constant 0 : i32
    %c0_i32_1 = arith.constant 0 : i32
    return %c0_i32, %c0_i32_0 : i32, i32
  }
  func.func @transform_8(%arg0: i32) -> (i32, i32) {
    %c0_i32 = arith.constant 0 : i32
    %c0_i32_0 = arith.constant 0 : i32
    %c0_i32_1 = arith.constant 0 : i32
    return %c0_i32, %c0_i32_0 : i32, i32
  }
  func.func @transform_9(%arg0: i32) -> (i32, i32) {
    %c0_i32 = arith.constant 0 : i32
    %c0_i32_0 = arith.constant 0 : i32
    %c0_i32_1 = arith.constant 0 : i32
    return %c0_i32, %c0_i32_0 : i32, i32
  }
  func.func @transform_10(%arg0: i32) -> (i32, i32) {
    %c0_i32 = arith.constant 0 : i32
    %c0_i32_0 = arith.constant 0 : i32
    %c0_i32_1 = arith.constant 0 : i32
    return %c0_i32, %c0_i32_0 : i32, i32
  }
  func.func @transform_11(%arg0: i32) -> (i32, i32) {
    %c0_i32 = arith.constant 0 : i32
    %c0_i32_0 = arith.constant 0 : i32
    %c0_i32_1 = arith.constant 0 : i32
    return %c0_i32, %c0_i32_0 : i32, i32
  }
  func.func @transform_12(%arg0: i32) -> (i32, i32) {
    %c0_i32 = arith.constant 0 : i32
    %c0_i32_0 = arith.constant 0 : i32
    %c0_i32_1 = arith.constant 0 : i32
    return %c0_i32, %c0_i32_0 : i32, i32
  }
  func.func @transform_13(%arg0: i32) -> (i32, i32) {
    %c0_i32 = arith.constant 0 : i32
    %c0_i32_0 = arith.constant 0 : i32
    %c0_i32_1 = arith.constant 0 : i32
    return %c0_i32, %c0_i32_0 : i32, i32
  }
  func.func @transform_14(%arg0: i32) -> (i32, i32) {
    %c0_i32 = arith.constant 0 : i32
    %c0_i32_0 = arith.constant 0 : i32
    %c0_i32_1 = arith.constant 0 : i32
    return %c0_i32, %c0_i32_0 : i32, i32
  }
  func.func @transform_15(%arg0: i32) -> (i32, i32) {
    %c0_i32 = arith.constant 0 : i32
    %c0_i32_0 = arith.constant 0 : i32
    return %arg0, %c0_i32 : i32, i32
  }
}

</mosaic_0001>

<llo_original>
// kernel: autoencoder_forward.1
$region0: #{autoencoder_forward.1}
  #allocation0 [shape = 'u32[]', space=smem, size = 0x4, offset = 0x4, fixed_abs, tag = 'smem constant byte address 0x4 - core index']
  #allocation1 [shape = 'u32[144,128]{1,0:T(1,128)}', space=vmem, size = 0x12000, scoped, tag = 'internal scratch']
  %s0 = inlined_call_operand.vmem [shape: f32[256,64], index: 0, kind: input, shape index: {}]
  %s1 = inlined_call_operand.vmem [shape: bf16[64,128], index: 1, kind: input, shape index: {}]
  %s2 = inlined_call_operand.vmem [shape: f32[1,128], index: 2, kind: input, shape index: {}]
  %s3 = inlined_call_operand.vmem [shape: bf16[128,64], index: 3, kind: input, shape index: {}]
  %s4 = inlined_call_operand.vmem [shape: f32[1,64], index: 4, kind: input, shape index: {}]
  %s5 = inlined_call_operand.vmem [shape: bf16[64,32], index: 5, kind: input, shape index: {}]
  %s6 = inlined_call_operand.vmem [shape: f32[1,32], index: 6, kind: input, shape index: {}]
  %s7 = inlined_call_operand.vmem [shape: bf16[32,32], index: 7, kind: input, shape index: {}]
  %s8 = inlined_call_operand.vmem [shape: f32[1,32], index: 8, kind: input, shape index: {}]
  %s9 = inlined_call_operand.vmem [shape: bf16[32,64], index: 9, kind: input, shape index: {}]
  %s10 = inlined_call_operand.vmem [shape: f32[1,64], index: 10, kind: input, shape index: {}]
  %s11 = inlined_call_operand.vmem [shape: bf16[64,128], index: 11, kind: input, shape index: {}]
  %s12 = inlined_call_operand.vmem [shape: f32[1,128], index: 12, kind: input, shape index: {}]
  %s13 = inlined_call_operand.vmem [shape: bf16[128,64], index: 13, kind: input, shape index: {}]
  %s14 = inlined_call_operand.vmem [shape: f32[1,64], index: 14, kind: input, shape index: {}]
  %s15 = inlined_call_operand.vmem [shape: f32[256,64], index: 15, kind: output, shape index: {}]
  %s16 = sld [smem:[#allocation0]]
  $region93: #{autoencoder_forward.1} parent=0
    _
  %s18 = ssub.s32 1, %s16
  %s19 = scalar_select 0, %s18, %s16
  loop: start=0, step=1, limit=4
  $region2: #{autoencoder_forward.1} parent=0 // loop_pre_header
    _
  $region3: #{autoencoder_forward.1} parent=0 // loop_header
    %s21 = sphi 0, %s25
    %p22 = scmp.ge.s32.totalorder %s21, 4
    %s31 = sphi 0, %s33
    %s34 = sphi 0, %s31
    %s35 = sphi 0, %s34
    %s51 = sphi 0, %s35
    %s55 = sphi 0, %s55
    %s57 = sphi 0, %s55
    %s58 = sphi 0, %s57
    %s72 = sphi 0, %s58
    %s76 = sphi 0, %s76
    %s78 = sphi 0, %s76
    %s79 = sphi 0, %s78
    %s93 = sphi 0, %s79
    %s97 = sphi 0, %s97
    %s99 = sphi 0, %s97
    %s100 = sphi 0, %s99
    %s114 = sphi 0, %s100
    %s118 = sphi 0, %s118
    %s120 = sphi 0, %s118
    %s121 = sphi 0, %s120
    %s135 = sphi 0, %s121
    %s139 = sphi 0, %s139
    %s141 = sphi 0, %s139
    %s142 = sphi 0, %s141
    %s156 = sphi 0, %s142
    %s160 = sphi 0, %s160
    %s162 = sphi 0, %s160
    %s163 = sphi 0, %s162
    %s177 = sphi 0, %s163
    %s181 = sphi 0, %s181
    %s183 = sphi 0, %s181
    %s184 = sphi 0, %s183
    %s198 = sphi 0, %s184
    %s202 = sphi 0, %s202
    %s204 = sphi 0, %s202
    %s205 = sphi 0, %s204
    %s219 = sphi 0, %s205
    %s223 = sphi 0, %s223
    %s225 = sphi 0, %s223
    %s226 = sphi 0, %s225
    %s240 = sphi 0, %s226
    %s244 = sphi 0, %s244
    %s246 = sphi 0, %s244
    %s247 = sphi 0, %s246
    %s261 = sphi 0, %s247
    %s265 = sphi 0, %s265
    %s267 = sphi 0, %s265
    %s268 = sphi 0, %s267
    %s282 = sphi 0, %s268
    %s286 = sphi 0, %s286
    %s288 = sphi 0, %s286
    %s289 = sphi 0, %s288
    %s303 = sphi 0, %s289
    %s307 = sphi 0, %s307
    %s309 = sphi 0, %s307
    %s310 = sphi 0, %s309
    %s324 = sphi 0, %s310
    %s328 = sphi 0, %s328
    %s330 = sphi 0, %s328
    %s331 = sphi 0, %s330
    %s345 = sphi 0, %s331
    %s351 = sphi 0, %s353
    %s354 = sphi 0, %s351
    %s355 = sphi 0, %s354
    %s371 = sphi 0, %s355
  $region4: #{autoencoder_forward.1} parent=0 // loop_header_branch
    %24 = sbr.rel (%p22) target = $region8
  $region5: #{autoencoder_forward.1} parent=0 // loop_body
    %s26 = ssub.s32 %s21, 1
    %s27 = ssub.s32 %s21, 2
    %s28 = sadd.s32 %s21, 1
    %s29 = ssub.s32 %s21, %s28
    %p30 = scmp.eq.s32.totalorder %s29, 0
    %s32 = sadd.s32 %s31, 1
    %s33 = scalar_select %p30, %s31, %s32
    %p36 = pneg %p30
    %p37 = scmp.eq.s32.totalorder %s21, 1
    %p38 = por %p36, %p37
    %p39 = scmp.ne.s32.totalorder %s31, %s34
    %p40 = scmp.eq.s32.totalorder %s21, 0
    %p41 = por %p39, %p40
    %p42 = scmp.ne.s32.totalorder %s31, %s34
    %p43 = scmp.eq.s32.totalorder %s26, 1
    %p44 = por %p42, %p43
    %p45 = scmp.ne.s32.totalorder %s34, %s35
    %p46 = scmp.eq.s32.totalorder %s26, 0
    %p47 = por %p45, %p46
    %p48 = scmp.ne.s32.totalorder %s34, %s35
    %p49 = scmp.eq.s32.totalorder %s27, 1
    %p50 = por %p48, %p49
    %p52 = scmp.ne.s32.totalorder %s35, %s51
    %p53 = scmp.eq.s32.totalorder %s27, 0
    %p54 = por %p52, %p53
    %s56 = sadd.s32 %s55, 1
    %p59 = scmp.eq.s32.totalorder %s21, 1
    %p60 = scmp.ne.s32.totalorder %s55, %s57
    %p61 = scmp.eq.s32.totalorder %s21, 0
    %p62 = por %p60, %p61
    %p63 = scmp.ne.s32.totalorder %s55, %s57
    %p64 = scmp.eq.s32.totalorder %s26, 1
    %p65 = por %p63, %p64
    %p66 = scmp.ne.s32.totalorder %s57, %s58
    %p67 = scmp.eq.s32.totalorder %s26, 0
    %p68 = por %p66, %p67
    %p69 = scmp.ne.s32.totalorder %s57, %s58
    %p70 = scmp.eq.s32.totalorder %s27, 1
    %p71 = por %p69, %p70
    %p73 = scmp.ne.s32.totalorder %s58, %s72
    %p74 = scmp.eq.s32.totalorder %s27, 0
    %p75 = por %p73, %p74
    %s77 = sadd.s32 %s76, 1
    %p80 = scmp.eq.s32.totalorder %s21, 1
    %p81 = scmp.ne.s32.totalorder %s76, %s78
    %p82 = scmp.eq.s32.totalorder %s21, 0
    %p83 = por %p81, %p82
    %p84 = scmp.ne.s32.totalorder %s76, %s78
    %p85 = scmp.eq.s32.totalorder %s26, 1
    %p86 = por %p84, %p85
    %p87 = scmp.ne.s32.totalorder %s78, %s79
    %p88 = scmp.eq.s32.totalorder %s26, 0
    %p89 = por %p87, %p88
    %p90 = scmp.ne.s32.totalorder %s78, %s79
    %p91 = scmp.eq.s32.totalorder %s27, 1
    %p92 = por %p90, %p91
    %p94 = scmp.ne.s32.totalorder %s79, %s93
    %p95 = scmp.eq.s32.totalorder %s27, 0
    %p96 = por %p94, %p95
    %s98 = sadd.s32 %s97, 1
    %p101 = scmp.eq.s32.totalorder %s21, 1
    %p102 = scmp.ne.s32.totalorder %s97, %s99
    %p103 = scmp.eq.s32.totalorder %s21, 0
    %p104 = por %p102, %p103
    %p105 = scmp.ne.s32.totalorder %s97, %s99
    %p106 = scmp.eq.s32.totalorder %s26, 1
    %p107 = por %p105, %p106
    %p108 = scmp.ne.s32.totalorder %s99, %s100
    %p109 = scmp.eq.s32.totalorder %s26, 0
    %p110 = por %p108, %p109
    %p111 = scmp.ne.s32.totalorder %s99, %s100
    %p112 = scmp.eq.s32.totalorder %s27, 1
    %p113 = por %p111, %p112
    %p115 = scmp.ne.s32.totalorder %s100, %s114
    %p116 = scmp.eq.s32.totalorder %s27, 0
    %p117 = por %p115, %p116
    %s119 = sadd.s32 %s118, 1
    %p122 = scmp.eq.s32.totalorder %s21, 1
    %p123 = scmp.ne.s32.totalorder %s118, %s120
    %p124 = scmp.eq.s32.totalorder %s21, 0
    %p125 = por %p123, %p124
    %p126 = scmp.ne.s32.totalorder %s118, %s120
    %p127 = scmp.eq.s32.totalorder %s26, 1
    %p128 = por %p126, %p127
    %p129 = scmp.ne.s32.totalorder %s120, %s121
    %p130 = scmp.eq.s32.totalorder %s26, 0
    %p131 = por %p129, %p130
    %p132 = scmp.ne.s32.totalorder %s120, %s121
    %p133 = scmp.eq.s32.totalorder %s27, 1
    %p134 = por %p132, %p133
    %p136 = scmp.ne.s32.totalorder %s121, %s135
    %p137 = scmp.eq.s32.totalorder %s27, 0
    %p138 = por %p136, %p137
    %s140 = sadd.s32 %s139, 1
    %p143 = scmp.eq.s32.totalorder %s21, 1
    %p144 = scmp.ne.s32.totalorder %s139, %s141
    %p145 = scmp.eq.s32.totalorder %s21, 0
    %p146 = por %p144, %p145
    %p147 = scmp.ne.s32.totalorder %s139, %s141
    %p148 = scmp.eq.s32.totalorder %s26, 1
    %p149 = por %p147, %p148
    %p150 = scmp.ne.s32.totalorder %s141, %s142
    %p151 = scmp.eq.s32.totalorder %s26, 0
    %p152 = por %p150, %p151
    %p153 = scmp.ne.s32.totalorder %s141, %s142
    %p154 = scmp.eq.s32.totalorder %s27, 1
    %p155 = por %p153, %p154
    %p157 = scmp.ne.s32.totalorder %s142, %s156
    %p158 = scmp.eq.s32.totalorder %s27, 0
    %p159 = por %p157, %p158
    %s161 = sadd.s32 %s160, 1
    %p164 = scmp.eq.s32.totalorder %s21, 1
    %p165 = scmp.ne.s32.totalorder %s160, %s162
    %p166 = scmp.eq.s32.totalorder %s21, 0
    %p167 = por %p165, %p166
    %p168 = scmp.ne.s32.totalorder %s160, %s162
    %p169 = scmp.eq.s32.totalorder %s26, 1
    %p170 = por %p168, %p169
    %p171 = scmp.ne.s32.totalorder %s162, %s163
    %p172 = scmp.eq.s32.totalorder %s26, 0
    %p173 = por %p171, %p172
    %p174 = scmp.ne.s32.totalorder %s162, %s163
    %p175 = scmp.eq.s32.totalorder %s27, 1
    %p176 = por %p174, %p175
    %p178 = scmp.ne.s32.totalorder %s163, %s177
    %p179 = scmp.eq.s32.totalorder %s27, 0
    %p180 = por %p178, %p179
    %s182 = sadd.s32 %s181, 1
    %p185 = scmp.eq.s32.totalorder %s21, 1
    %p186 = scmp.ne.s32.totalorder %s181, %s183
    %p187 = scmp.eq.s32.totalorder %s21, 0
    %p188 = por %p186, %p187
    %p189 = scmp.ne.s32.totalorder %s181, %s183
    %p190 = scmp.eq.s32.totalorder %s26, 1
    %p191 = por %p189, %p190
    %p192 = scmp.ne.s32.totalorder %s183, %s184
    %p193 = scmp.eq.s32.totalorder %s26, 0
    %p194 = por %p192, %p193
    %p195 = scmp.ne.s32.totalorder %s183, %s184
    %p196 = scmp.eq.s32.totalorder %s27, 1
    %p197 = por %p195, %p196
    %p199 = scmp.ne.s32.totalorder %s184, %s198
    %p200 = scmp.eq.s32.totalorder %s27, 0
    %p201 = por %p199, %p200
    %s203 = sadd.s32 %s202, 1
    %p206 = scmp.eq.s32.totalorder %s21, 1
    %p207 = scmp.ne.s32.totalorder %s202, %s204
    %p208 = scmp.eq.s32.totalorder %s21, 0
    %p209 = por %p207, %p208
    %p210 = scmp.ne.s32.totalorder %s202, %s204
    %p211 = scmp.eq.s32.totalorder %s26, 1
    %p212 = por %p210, %p211
    %p213 = scmp.ne.s32.totalorder %s204, %s205
    %p214 = scmp.eq.s32.totalorder %s26, 0
    %p215 = por %p213, %p214
    %p216 = scmp.ne.s32.totalorder %s204, %s205
    %p217 = scmp.eq.s32.totalorder %s27, 1
    %p218 = por %p216, %p217
    %p220 = scmp.ne.s32.totalorder %s205, %s219
    %p221 = scmp.eq.s32.totalorder %s27, 0
    %p222 = por %p220, %p221
    %s224 = sadd.s32 %s223, 1
    %p227 = scmp.eq.s32.totalorder %s21, 1
    %p228 = scmp.ne.s32.totalorder %s223, %s225
    %p229 = scmp.eq.s32.totalorder %s21, 0
    %p230 = por %p228, %p229
    %p231 = scmp.ne.s32.totalorder %s223, %s225
    %p232 = scmp.eq.s32.totalorder %s26, 1
    %p233 = por %p231, %p232
    %p234 = scmp.ne.s32.totalorder %s225, %s226
    %p235 = scmp.eq.s32.totalorder %s26, 0
    %p236 = por %p234, %p235
    %p237 = scmp.ne.s32.totalorder %s225, %s226
    %p238 = scmp.eq.s32.totalorder %s27, 1
    %p239 = por %p237, %p238
    %p241 = scmp.ne.s32.totalorder %s226, %s240
    %p242 = scmp.eq.s32.totalorder %s27, 0
    %p243 = por %p241, %p242
    %s245 = sadd.s32 %s244, 1
    %p248 = scmp.eq.s32.totalorder %s21, 1
    %p249 = scmp.ne.s32.totalorder %s244, %s246
    %p250 = scmp.eq.s32.totalorder %s21, 0
    %p251 = por %p249, %p250
    %p252 = scmp.ne.s32.totalorder %s244, %s246
    %p253 = scmp.eq.s32.totalorder %s26, 1
    %p254 = por %p252, %p253
    %p255 = scmp.ne.s32.totalorder %s246, %s247
    %p256 = scmp.eq.s32.totalorder %s26, 0
    %p257 = por %p255, %p256
    %p258 = scmp.ne.s32.totalorder %s246, %s247
    %p259 = scmp.eq.s32.totalorder %s27, 1
    %p260 = por %p258, %p259
    %p262 = scmp.ne.s32.totalorder %s247, %s261
    %p263 = scmp.eq.s32.totalorder %s27, 0
    %p264 = por %p262, %p263
    %s266 = sadd.s32 %s265, 1
    %p269 = scmp.eq.s32.totalorder %s21, 1
    %p270 = scmp.ne.s32.totalorder %s265, %s267
    %p271 = scmp.eq.s32.totalorder %s21, 0
    %p272 = por %p270, %p271
    %p273 = scmp.ne.s32.totalorder %s265, %s267
    %p274 = scmp.eq.s32.totalorder %s26, 1
    %p275 = por %p273, %p274
    %p276 = scmp.ne.s32.totalorder %s267, %s268
    %p277 = scmp.eq.s32.totalorder %s26, 0
    %p278 = por %p276, %p277
    %p279 = scmp.ne.s32.totalorder %s267, %s268
    %p280 = scmp.eq.s32.totalorder %s27, 1
    %p281 = por %p279, %p280
    %p283 = scmp.ne.s32.totalorder %s268, %s282
    %p284 = scmp.eq.s32.totalorder %s27, 0
    %p285 = por %p283, %p284
    %s287 = sadd.s32 %s286, 1
    %p290 = scmp.eq.s32.totalorder %s21, 1
    %p291 = scmp.ne.s32.totalorder %s286, %s288
    %p292 = scmp.eq.s32.totalorder %s21, 0
    %p293 = por %p291, %p292
    %p294 = scmp.ne.s32.totalorder %s286, %s288
    %p295 = scmp.eq.s32.totalorder %s26, 1
    %p296 = por %p294, %p295
    %p297 = scmp.ne.s32.totalorder %s288, %s289
    %p298 = scmp.eq.s32.totalorder %s26, 0
    %p299 = por %p297, %p298
    %p300 = scmp.ne.s32.totalorder %s288, %s289
    %p301 = scmp.eq.s32.totalorder %s27, 1
    %p302 = por %p300, %p301
    %p304 = scmp.ne.s32.totalorder %s289, %s303
    %p305 = scmp.eq.s32.totalorder %s27, 0
    %p306 = por %p304, %p305
    %s308 = sadd.s32 %s307, 1
    %p311 = scmp.eq.s32.totalorder %s21, 1
    %p312 = scmp.ne.s32.totalorder %s307, %s309
    %p313 = scmp.eq.s32.totalorder %s21, 0
    %p314 = por %p312, %p313
    %p315 = scmp.ne.s32.totalorder %s307, %s309
    %p316 = scmp.eq.s32.totalorder %s26, 1
    %p317 = por %p315, %p316
    %p318 = scmp.ne.s32.totalorder %s309, %s310
    %p319 = scmp.eq.s32.totalorder %s26, 0
    %p320 = por %p318, %p319
    %p321 = scmp.ne.s32.totalorder %s309, %s310
    %p322 = scmp.eq.s32.totalorder %s27, 1
    %p323 = por %p321, %p322
    %p325 = scmp.ne.s32.totalorder %s310, %s324
    %p326 = scmp.eq.s32.totalorder %s27, 0
    %p327 = por %p325, %p326
    %s329 = sadd.s32 %s328, 1
    %p332 = scmp.eq.s32.totalorder %s21, 1
    %p333 = scmp.ne.s32.totalorder %s328, %s330
    %p334 = scmp.eq.s32.totalorder %s21, 0
    %p335 = por %p333, %p334
    %p336 = scmp.ne.s32.totalorder %s328, %s330
    %p337 = scmp.eq.s32.totalorder %s26, 1
    %p338 = por %p336, %p337
    %p339 = scmp.ne.s32.totalorder %s330, %s331
    %p340 = scmp.eq.s32.totalorder %s26, 0
    %p341 = por %p339, %p340
    %p342 = scmp.ne.s32.totalorder %s330, %s331
    %p343 = scmp.eq.s32.totalorder %s27, 1
    %p344 = por %p342, %p343
    %p346 = scmp.ne.s32.totalorder %s331, %s345
    %p347 = scmp.eq.s32.totalorder %s27, 0
    %p348 = por %p346, %p347
    %s349 = ssub.s32 %s21, %s28
    %p350 = scmp.eq.s32.totalorder %s349, 0
    %s352 = sadd.s32 %s351, 1
    %s353 = scalar_select %p350, %s351, %s352
    %p356 = pneg %p350
    %p357 = scmp.eq.s32.totalorder %s21, 1
    %p358 = por %p356, %p357
    %p359 = scmp.ne.s32.totalorder %s351, %s354
    %p360 = scmp.eq.s32.totalorder %s21, 0
    %p361 = por %p359, %p360
    %p362 = scmp.ne.s32.totalorder %s351, %s354
    %p363 = scmp.eq.s32.totalorder %s26, 1
    %p364 = por %p362, %p363
    %p365 = scmp.ne.s32.totalorder %s354, %s355
    %p366 = scmp.eq.s32.totalorder %s26, 0
    %p367 = por %p365, %p366
    %p368 = scmp.ne.s32.totalorder %s354, %s355
    %p369 = scmp.eq.s32.totalorder %s27, 1
    %p370 = por %p368, %p369
    %p372 = scmp.ne.s32.totalorder %s355, %s371
    %p373 = scmp.eq.s32.totalorder %s27, 0
    %p374 = por %p372, %p373
    %p375 = scmp.le.s32.totalorder 1, %s21
    %p376 = scmp.lt.s32.totalorder %s21, 3
    %p377 = pnand %p375, %p376
    %p378 = pneg %p377
    // Predicated region
    $region9: #{autoencoder_forward.1} parent=5 // pred_check
      _
    $region10: #{autoencoder_forward.1} parent=5 // pred_check_branch
      %380 = sbr.rel (%p377) target = $region12
    $region11: #{autoencoder_forward.1} parent=5 // pred_region
      %s381 = ssub.s32 %s21, 1
      // Predicated region
      $region13: #{autoencoder_forward.1} parent=11 // pred_check
        %p382 = pneg %p68
      $region14: #{autoencoder_forward.1} parent=11 // pred_check_branch
        %384 = sbr.rel (%p382) target = $region16
      $region15: #{autoencoder_forward.1} parent=11 // pred_region
        _
      $region16: #{autoencoder_forward.1} parent=11 // pred_fallthru
        _
      // Predicated region
      $region17: #{autoencoder_forward.1} parent=11 // pred_check
        %p385 = pneg %p89
      $region18: #{autoencoder_forward.1} parent=11 // pred_check_branch
        %387 = sbr.rel (%p385) target = $region20
      $region19: #{autoencoder_forward.1} parent=11 // pred_region
        _
      $region20: #{autoencoder_forward.1} parent=11 // pred_fallthru
        _
      // Predicated region
      $region21: #{autoencoder_forward.1} parent=11 // pred_check
        %p388 = pneg %p110
      $region22: #{autoencoder_forward.1} parent=11 // pred_check_branch
        %390 = sbr.rel (%p388) target = $region24
      $region23: #{autoencoder_forward.1} parent=11 // pred_region
        _
      $region24: #{autoencoder_forward.1} parent=11 // pred_fallthru
        _
      // Predicated region
      $region25: #{autoencoder_forward.1} parent=11 // pred_check
        %p391 = pneg %p131
      $region26: #{autoencoder_forward.1} parent=11 // pred_check_branch
        %393 = sbr.rel (%p391) target = $region28
      $region27: #{autoencoder_forward.1} parent=11 // pred_region
        _
      $region28: #{autoencoder_forward.1} parent=11 // pred_fallthru
        _
      // Predicated region
      $region29: #{autoencoder_forward.1} parent=11 // pred_check
        %p394 = pneg %p152
      $region30: #{autoencoder_forward.1} parent=11 // pred_check_branch
        %396 = sbr.rel (%p394) target = $region32
      $region31: #{autoencoder_forward.1} parent=11 // pred_region
        _
      $region32: #{autoencoder_forward.1} parent=11 // pred_fallthru
        _
      // Predicated region
      $region33: #{autoencoder_forward.1} parent=11 // pred_check
        %p397 = pneg %p173
      $region34: #{autoencoder_forward.1} parent=11 // pred_check_branch
        %399 = sbr.rel (%p397) target = $region36
      $region35: #{autoencoder_forward.1} parent=11 // pred_region
        _
      $region36: #{autoencoder_forward.1} parent=11 // pred_fallthru
        _
      // Predicated region
      $region37: #{autoencoder_forward.1} parent=11 // pred_check
        %p400 = pneg %p194
      $region38: #{autoencoder_forward.1} parent=11 // pred_check_branch
        %402 = sbr.rel (%p400) target = $region40
      $region39: #{autoencoder_forward.1} parent=11 // pred_region
        _
      $region40: #{autoencoder_forward.1} parent=11 // pred_fallthru
        _
      // Predicated region
      $region41: #{autoencoder_forward.1} parent=11 // pred_check
        %p403 = pneg %p215
      $region42: #{autoencoder_forward.1} parent=11 // pred_check_branch
        %405 = sbr.rel (%p403) target = $region44
      $region43: #{autoencoder_forward.1} parent=11 // pred_region
        _
      $region44: #{autoencoder_forward.1} parent=11 // pred_fallthru
        _
      // Predicated region
      $region45: #{autoencoder_forward.1} parent=11 // pred_check
        %p406 = pneg %p236
      $region46: #{autoencoder_forward.1} parent=11 // pred_check_branch
        %408 = sbr.rel (%p406) target = $region48
      $region47: #{autoencoder_forward.1} parent=11 // pred_region
        _
      $region48: #{autoencoder_forward.1} parent=11 // pred_fallthru
        _
      // Predicated region
      $region49: #{autoencoder_forward.1} parent=11 // pred_check
        %p409 = pneg %p257
      $region50: #{autoencoder_forward.1} parent=11 // pred_check_branch
        %411 = sbr.rel (%p409) target = $region52
      $region51: #{autoencoder_forward.1} parent=11 // pred_region
        _
      $region52: #{autoencoder_forward.1} parent=11 // pred_fallthru
        _
      // Predicated region
      $region53: #{autoencoder_forward.1} parent=11 // pred_check
        %p412 = pneg %p278
      $region54: #{autoencoder_forward.1} parent=11 // pred_check_branch
        %414 = sbr.rel (%p412) target = $region56
      $region55: #{autoencoder_forward.1} parent=11 // pred_region
        _
      $region56: #{autoencoder_forward.1} parent=11 // pred_fallthru
        _
      // Predicated region
      $region57: #{autoencoder_forward.1} parent=11 // pred_check
        %p415 = pneg %p299
      $region58: #{autoencoder_forward.1} parent=11 // pred_check_branch
        %417 = sbr.rel (%p415) target = $region60
      $region59: #{autoencoder_forward.1} parent=11 // pred_region
        _
      $region60: #{autoencoder_forward.1} parent=11 // pred_fallthru
        _
      // Predicated region
      $region61: #{autoencoder_forward.1} parent=11 // pred_check
        %p418 = pneg %p320
      $region62: #{autoencoder_forward.1} parent=11 // pred_check_branch
        %420 = sbr.rel (%p418) target = $region64
      $region63: #{autoencoder_forward.1} parent=11 // pred_region
        _
      $region64: #{autoencoder_forward.1} parent=11 // pred_fallthru
        _
      // Predicated region
      $region65: #{autoencoder_forward.1} parent=11 // pred_check
        %p421 = pneg %p341
      $region66: #{autoencoder_forward.1} parent=11 // pred_check_branch
        %423 = sbr.rel (%p421) target = $region68
      $region67: #{autoencoder_forward.1} parent=11 // pred_region
        _
      $region68: #{autoencoder_forward.1} parent=11 // pred_fallthru
        _
    $region12: #{autoencoder_forward.1} parent=5 // pred_fallthru
      _
    %p424 = scmp.lt.s32.totalorder %s21, 2
    // Predicated region
    $region69: #{autoencoder_forward.1} parent=5 // pred_check
      %p425 = pneg %p424
    $region70: #{autoencoder_forward.1} parent=5 // pred_check_branch
      %427 = sbr.rel (%p425) target = $region72
    $region71: #{autoencoder_forward.1} parent=5 // pred_region
      // Predicated region
      $region73: #{autoencoder_forward.1} parent=71 // pred_check
        %p428 = pneg %p41
      $region74: #{autoencoder_forward.1} parent=71 // pred_check_branch
        %430 = sbr.rel (%p428) target = $region76
      $region75: #{autoencoder_forward.1} parent=71 // pred_region
        %s431 = smul.u32 16, %s21
        %p432 = scmp.lt.s32.totalorder %s431, 31
        %s433 = scalar_select %p432, %s431, 31
        %s434 = smul.addr %s433, 8
        %s435 = scalar_lea.vmem %s0, %s434
        %s436 = smul.u32 16, %s21
      $region76: #{autoencoder_forward.1} parent=71 // pred_fallthru
        _
    $region72: #{autoencoder_forward.1} parent=5 // pred_fallthru
      _
    %p437 = scmp.le.s32.totalorder 1, %s21
    %p438 = scmp.lt.s32.totalorder %s21, 3
    %p439 = pnand %p437, %p438
    %p440 = pneg %p439
    // Predicated region
    $region77: #{autoencoder_forward.1} parent=5 // pred_check
      _
    $region78: #{autoencoder_forward.1} parent=5 // pred_check_branch
      %442 = sbr.rel (%p439) target = $region80
    $region79: #{autoencoder_forward.1} parent=5 // pred_region
      %s443 = ssub.s32 %s21, 1
      %s444 = smul.u32 16, %s26
      %p445 = scmp.lt.s32.totalorder %s444, 31
      %s446 = scalar_select %p445, %s444, 31
      %s447 = smul.addr %s446, 8
      %s448 = scalar_lea.vmem %s0, %s447
      %p449 = pneg %p47
      %p450 = pneg %p44
      %p451 = pneg %p68
      %p452 = pneg %p65
      %p453 = pneg %p89
      %p454 = pneg %p86
      %p455 = pneg %p110
      %p456 = pneg %p107
      %p457 = pneg %p131
      %p458 = pneg %p128
      %p459 = pneg %p152
      %p460 = pneg %p149
      %p461 = pneg %p173
      %p462 = pneg %p170
      %p463 = pneg %p194
      %p464 = pneg %p191
      %p465 = pneg %p215
      %p466 = pneg %p212
      %p467 = pneg %p236
      %p468 = pneg %p233
      %p469 = pneg %p257
      %p470 = pneg %p254
      %p471 = pneg %p278
      %p472 = pneg %p275
      %p473 = pneg %p299
      %p474 = pneg %p296
      %p475 = pneg %p320
      %p476 = pneg %p317
      %p477 = pneg %p341
      %p478 = pneg %p338
      %p479 = pneg %p367
      %p480 = pneg %p364
      %s481 = smul.u32 16, %s26
      %p482 = scmp.lt.s32.totalorder %s481, 31
      %s483 = scalar_select %p482, %s481, 31
      %s484 = smul.addr %s483, 8
      %s485 = scalar_lea.vmem %s15, %s484
      %s486 = smul.u32 16, %s26
      %p487 = scmp.lt.s32.totalorder %s486, 31
      %s488 = scalar_select %p487, %s486, 31
      %s489 = smul.addr %s488, 8
      %s490 = scalar_lea.vmem %s0, %s489
      %s491 = smul.u32 16, %s26
      %s492 = smul.u32 16, %s26
      %p493 = scmp.lt.s32.totalorder %s492, 31
      %s494 = scalar_select %p493, %s492, 31
      %s495 = smul.addr %s494, 8
      %s496 = scalar_lea.vmem %s15, %s495
      %s497 = smul.u32 16, %s26
      %v499 = vld [vmem:[%s490] sm:$0xff]
      %v500 = vld [vmem:[%s490 + $0x8] sm:$0xff]
      %v501 = vld [vmem:[%s490 + $0x10] sm:$0xff]
      %v502 = vld [vmem:[%s490 + $0x18] sm:$0xff]
      %v503 = vld [vmem:[%s490 + $0x20] sm:$0xff]
      %v504 = vld [vmem:[%s490 + $0x28] sm:$0xff]
      %v505 = vld [vmem:[%s490 + $0x30] sm:$0xff]
      %v506 = vld [vmem:[%s490 + $0x38] sm:$0xff]
      %v507 = vld [vmem:[%s490 + $0x40] sm:$0xff]
      %v508 = vld [vmem:[%s490 + $0x48] sm:$0xff]
      %v509 = vld [vmem:[%s490 + $0x50] sm:$0xff]
      %v510 = vld [vmem:[%s490 + $0x58] sm:$0xff]
      %v511 = vld [vmem:[%s490 + $0x60] sm:$0xff]
      %v512 = vld [vmem:[%s490 + $0x68] sm:$0xff]
      %v513 = vld [vmem:[%s490 + $0x70] sm:$0xff]
      %v514 = vld [vmem:[%s490 + $0x78] sm:$0xff]
      %v515 = vld [vmem:[%s1] sm:$0xf]
      %v516 = vld [vmem:[%s1 + $0x4] sm:$0xf]
      %v517 = vld [vmem:[%s1 + $0x8] sm:$0xf]
      %v518 = vld [vmem:[%s1 + $0xc] sm:$0xf]
      %v519 = vld [vmem:[%s1 + $0x10] sm:$0xf]
      %v520 = vld [vmem:[%s1 + $0x14] sm:$0xf]
      %v521 = vld [vmem:[%s1 + $0x18] sm:$0xf]
      %v522 = vld [vmem:[%s1 + $0x1c] sm:$0xf]
      %v523 = vld [vmem:[%s2] sm:$0x1]
      %v524 = vpack.c.bf16 %v500, %v499
      %v525 = vpack.c.bf16 %v502, %v501
      %v526 = vpack.c.bf16 %v504, %v503
      %v527 = vpack.c.bf16 %v506, %v505
      %v528 = vpack.c.bf16 %v508, %v507
      %v529 = vpack.c.bf16 %v510, %v509
      %v530 = vpack.c.bf16 %v512, %v511
      %v531 = vpack.c.bf16 %v514, %v513
      %v533 = vlaneseq
      %v534 = vshrl.u32 %v533, 7
      %v535 = vsub.s32 0, %v534
      %v536 = vrot.slane %v523, %v535
      %v546 = vunpack.c.l.b16 %v515
      %v547 = vunpack.c.l.b16 %v516
      %v548 = vunpack.c.l.b16 %v517
      %v549 = vunpack.c.l.b16 %v518
      %v550 = vunpack.c.l.b16 %v519
      %v551 = vunpack.c.l.b16 %v520
      %v552 = vunpack.c.l.b16 %v521
      %v553 = vunpack.c.l.b16 %v522
      %v554 = vpack.c.b16 %v547, %v546
      %v555 = vpack.c.b16 %v549, %v548
      %v556 = vpack.c.b16 %v551, %v550
      %v557 = vpack.c.b16 %v553, %v552
      %vm562 = vcmask 523264
      %v564 = vsel %vm562, %v524, 0
      %v567 = vsel %vm562, %v525, 0
      %v570 = vsel %vm562, %v526, 0
      %v573 = vsel %vm562, %v527, 0
      %v576 = vsel %vm562, %v528, 0
      %v579 = vsel %vm562, %v529, 0
      %v582 = vsel %vm562, %v530, 0
      %v585 = vsel %vm562, %v531, 0
      %587 = vmatprep.subr.bf16.mxu0 0
      %588 = vmatpush1.bf16.msra.mxu0 0
      %589 = vmatprep.subr.bf16.mxu0 0
      %590 = vmatpush1.bf16.msra.mxu0 0
      %591 = vmatprep.subr.bf16.mxu0 0
      %592 = vmatpush1.bf16.msra.mxu0 0
      %593 = vmatprep.subr.bf16.mxu0 0
      %594 = vmatpush1.bf16.msra.mxu0 0
      %595 = vmatprep.subr.bf16.mxu0 0
      %596 = vmatpush1.bf16.msra.mxu0 %v557
      %597 = vmatprep.subr.bf16.mxu0 0
      %598 = vmatpush1.bf16.msra.mxu0 %v556
      %599 = vmatprep.subr.bf16.mxu0 0
      %600 = vmatpush1.bf16.msra.mxu0 %v555
      %601 = vmatprep.subr.bf16.mxu0 0
      %602 = vmatpush1.bf16.msra.mxu0 %v554
      %603 = vmatprep.subr.bf16.mxu0 0
      %604 = vmatpush2.bf16.msra.mxu0 0
      %605 = vmatprep.subr.bf16.mxu0 0
      %606 = vmatpush2.bf16.msra.mxu0 0
      %607 = vmatprep.subr.bf16.mxu0 0
      %608 = vmatpush2.bf16.msra.mxu0 0
      %609 = vmatprep.subr.bf16.mxu0 0
      %610 = vmatpush2.bf16.msra.mxu0 0
      %611 = vmatprep.subr.bf16.mxu0 0
      %612 = vmatpush2.bf16.msra.mxu0 0
      %613 = vmatprep.subr.bf16.mxu0 0
      %614 = vmatpush2.bf16.msra.mxu0 0
      %615 = vmatprep.subr.bf16.mxu0 0
      %616 = vmatpush2.bf16.msra.mxu0 0
      %617 = vmatprep.subr.bf16.mxu0 0
      %618 = vmatpush2.bf16.msra.mxu0 0
      %619 = vmatprep.mubr.bf16.mxu0 0
      %620 = vmatmul.mubr.bf16.gmra.mxu0 %v564
      %v621 = vpop.f32.mrf.mxu0
      %v622 = vadd.f32 %v536, %v621
      %v623 = vpop.f32.mrf.mxu0
      %v624 = vpop.f32.mrf.mxu0
      %v625 = vadd.f32 %v536, %v624
      %v626 = vpop.f32.mrf.mxu0
      %627 = vmatprep.mubr.bf16.mxu0 0
      %628 = vmatmul.mubr.bf16.gmra.mxu0 %v567
      %v629 = vpop.f32.mrf.mxu0
      %v630 = vadd.f32 %v536, %v629
      %v631 = vpop.f32.mrf.mxu0
      %v632 = vpop.f32.mrf.mxu0
      %v633 = vadd.f32 %v536, %v632
      %v634 = vpop.f32.mrf.mxu0
      %635 = vmatprep.mubr.bf16.mxu0 0
      %636 = vmatmul.mubr.bf16.gmra.mxu0 %v570
      %v637 = vpop.f32.mrf.mxu0
      %v638 = vadd.f32 %v536, %v637
      %v639 = vpop.f32.mrf.mxu0
      %v640 = vpop.f32.mrf.mxu0
      %v641 = vadd.f32 %v536, %v640
      %v642 = vpop.f32.mrf.mxu0
      %643 = vmatprep.mubr.bf16.mxu0 0
      %644 = vmatmul.mubr.bf16.gmra.mxu0 %v573
      %v645 = vpop.f32.mrf.mxu0
      %v646 = vadd.f32 %v536, %v645
      %v647 = vpop.f32.mrf.mxu0
      %v648 = vpop.f32.mrf.mxu0
      %v649 = vadd.f32 %v536, %v648
      %v650 = vpop.f32.mrf.mxu0
      %651 = vmatprep.mubr.bf16.mxu0 0
      %652 = vmatmul.mubr.bf16.gmra.mxu0 %v576
      %v653 = vpop.f32.mrf.mxu0
      %v654 = vadd.f32 %v536, %v653
      %v655 = vpop.f32.mrf.mxu0
      %v656 = vpop.f32.mrf.mxu0
      %v657 = vadd.f32 %v536, %v656
      %v658 = vpop.f32.mrf.mxu0
      %659 = vmatprep.mubr.bf16.mxu0 0
      %660 = vmatmul.mubr.bf16.gmra.mxu0 %v579
      %v661 = vpop.f32.mrf.mxu0
      %v662 = vadd.f32 %v536, %v661
      %v663 = vpop.f32.mrf.mxu0
      %v664 = vpop.f32.mrf.mxu0
      %v665 = vadd.f32 %v536, %v664
      %v666 = vpop.f32.mrf.mxu0
      %667 = vmatprep.mubr.bf16.mxu0 0
      %668 = vmatmul.mubr.bf16.gmra.mxu0 %v582
      %v669 = vpop.f32.mrf.mxu0
      %v670 = vadd.f32 %v536, %v669
      %v671 = vpop.f32.mrf.mxu0
      %v672 = vpop.f32.mrf.mxu0
      %v673 = vadd.f32 %v536, %v672
      %v674 = vpop.f32.mrf.mxu0
      %675 = vmatprep.mubr.bf16.mxu0 0
      %676 = vmatmul.mubr.bf16.gmra.mxu0 %v585
      %v677 = vpop.f32.mrf.mxu0
      %v678 = vadd.f32 %v536, %v677
      %v679 = vpop.f32.mrf.mxu0
      %v680 = vpop.f32.mrf.mxu0
      %v681 = vadd.f32 %v536, %v680
      %v682 = vpop.f32.mrf.mxu0
      %683 = vdwg.mxu0
      %v684 = vmax.f32 %v622, 0.0
      %v685 = vmax.f32 %v625, 0.0
      %v686 = vmax.f32 %v630, 0.0
      %v687 = vmax.f32 %v633, 0.0
      %v688 = vmax.f32 %v638, 0.0
      %v689 = vmax.f32 %v641, 0.0
      %v690 = vmax.f32 %v646, 0.0
      %v691 = vmax.f32 %v649, 0.0
      %v692 = vmax.f32 %v654, 0.0
      %v693 = vmax.f32 %v657, 0.0
      %v694 = vmax.f32 %v662, 0.0
      %v695 = vmax.f32 %v665, 0.0
      %v696 = vmax.f32 %v670, 0.0
      %v697 = vmax.f32 %v673, 0.0
      %v698 = vmax.f32 %v678, 0.0
      %v699 = vmax.f32 %v681, 0.0
      %v700 = vld [vmem:[%s3] sm:$0xf]
      %v701 = vld [vmem:[%s3 + $0x4] sm:$0xf]
      %v702 = vld [vmem:[%s3 + $0x8] sm:$0xf]
      %v703 = vld [vmem:[%s3 + $0xc] sm:$0xf]
      %v704 = vld [vmem:[%s3 + $0x10] sm:$0xf]
      %v705 = vld [vmem:[%s3 + $0x14] sm:$0xf]
      %v706 = vld [vmem:[%s3 + $0x18] sm:$0xf]
      %v707 = vld [vmem:[%s3 + $0x1c] sm:$0xf]
      %v708 = vld [vmem:[%s3 + $0x20] sm:$0xf]
      %v709 = vld [vmem:[%s3 + $0x24] sm:$0xf]
      %v710 = vld [vmem:[%s3 + $0x28] sm:$0xf]
      %v711 = vld [vmem:[%s3 + $0x2c] sm:$0xf]
      %v712 = vld [vmem:[%s3 + $0x30] sm:$0xf]
      %v713 = vld [vmem:[%s3 + $0x34] sm:$0xf]
      %v714 = vld [vmem:[%s3 + $0x38] sm:$0xf]
      %v715 = vld [vmem:[%s3 + $0x3c] sm:$0xf]
      %v716 = vld [vmem:[%s4] sm:$0x1]
      %v717 = vpack.c.bf16 %v685, %v684
      %v718 = vpack.c.bf16 %v687, %v686
      %v719 = vpack.c.bf16 %v689, %v688
      %v720 = vpack.c.bf16 %v691, %v690
      %v721 = vpack.c.bf16 %v693, %v692
      %v722 = vpack.c.bf16 %v695, %v694
      %v723 = vpack.c.bf16 %v697, %v696
      %v724 = vpack.c.bf16 %v699, %v698
      %v726 = vlaneseq
      %v727 = vshrl.u32 %v726, 7
      %v728 = vsub.s32 0, %v727
      %v729 = vrot.slane %v716, %v728
      %v747 = vunpack.c.l.b16 %v700
      %v748 = vunpack.c.l.b16 %v701
      %v749 = vunpack.c.l.b16 %v702
      %v750 = vunpack.c.l.b16 %v703
      %v751 = vunpack.c.l.b16 %v704
      %v752 = vunpack.c.l.b16 %v705
      %v753 = vunpack.c.l.b16 %v706
      %v754 = vunpack.c.l.b16 %v707
      %v755 = vunpack.c.l.b16 %v708
      %v756 = vunpack.c.l.b16 %v709
      %v757 = vunpack.c.l.b16 %v710
      %v758 = vunpack.c.l.b16 %v711
      %v759 = vunpack.c.l.b16 %v712
      %v760 = vunpack.c.l.b16 %v713
      %v761 = vunpack.c.l.b16 %v714
      %v762 = vunpack.c.l.b16 %v715
      %v763 = vpack.c.b16 %v748, %v747
      %v764 = vpack.c.b16 %v750, %v749
      %v765 = vpack.c.b16 %v752, %v751
      %v766 = vpack.c.b16 %v754, %v753
      %v767 = vpack.c.b16 %v756, %v755
      %v768 = vpack.c.b16 %v758, %v757
      %v769 = vpack.c.b16 %v760, %v759
      %v770 = vpack.c.b16 %v762, %v761
      %779 = vmatprep.subr.bf16.mxu0 0
      %780 = vmatpush1.bf16.msra.mxu0 %v770
      %781 = vmatprep.subr.bf16.mxu0 0
      %782 = vmatpush1.bf16.msra.mxu0 %v769
      %783 = vmatprep.subr.bf16.mxu0 0
      %784 = vmatpush1.bf16.msra.mxu0 %v768
      %785 = vmatprep.subr.bf16.mxu0 0
      %786 = vmatpush1.bf16.msra.mxu0 %v767
      %787 = vmatprep.subr.bf16.mxu0 0
      %788 = vmatpush1.bf16.msra.mxu0 %v766
      %789 = vmatprep.subr.bf16.mxu0 0
      %790 = vmatpush1.bf16.msra.mxu0 %v765
      %791 = vmatprep.subr.bf16.mxu0 0
      %792 = vmatpush1.bf16.msra.mxu0 %v764
      %793 = vmatprep.subr.bf16.mxu0 0
      %794 = vmatpush1.bf16.msra.mxu0 %v763
      %795 = vmatprep.subr.bf16.mxu0 0
      %796 = vmatpush2.bf16.msra.mxu0 0
      %797 = vmatprep.subr.bf16.mxu0 0
      %798 = vmatpush2.bf16.msra.mxu0 0
      %799 = vmatprep.subr.bf16.mxu0 0
      %800 = vmatpush2.bf16.msra.mxu0 0
      %801 = vmatprep.subr.bf16.mxu0 0
      %802 = vmatpush2.bf16.msra.mxu0 0
      %803 = vmatprep.subr.bf16.mxu0 0
      %804 = vmatpush2.bf16.msra.mxu0 0
      %805 = vmatprep.subr.bf16.mxu0 0
      %806 = vmatpush2.bf16.msra.mxu0 0
      %807 = vmatprep.subr.bf16.mxu0 0
      %808 = vmatpush2.bf16.msra.mxu0 0
      %809 = vmatprep.subr.bf16.mxu0 0
      %810 = vmatpush2.bf16.msra.mxu0 0
      %811 = vmatprep.mubr.bf16.mxu0 0
      %812 = vmatmul.mubr.bf16.gmra.mxu0 %v717
      %v813 = vpop.f32.mrf.mxu0
      %v814 = vadd.f32 %v729, %v813
      %v815 = vpop.f32.mrf.mxu0
      %v816 = vpop.f32.mrf.mxu0
      %v817 = vadd.f32 %v729, %v816
      %v818 = vpop.f32.mrf.mxu0
      %819 = vmatprep.mubr.bf16.mxu0 0
      %820 = vmatmul.mubr.bf16.gmra.mxu0 %v718
      %v821 = vpop.f32.mrf.mxu0
      %v822 = vadd.f32 %v729, %v821
      %v823 = vpop.f32.mrf.mxu0
      %v824 = vpop.f32.mrf.mxu0
      %v825 = vadd.f32 %v729, %v824
      %v826 = vpop.f32.mrf.mxu0
      %827 = vmatprep.mubr.bf16.mxu0 0
      %828 = vmatmul.mubr.bf16.gmra.mxu0 %v719
      %v829 = vpop.f32.mrf.mxu0
      %v830 = vadd.f32 %v729, %v829
      %v831 = vpop.f32.mrf.mxu0
      %v832 = vpop.f32.mrf.mxu0
      %v833 = vadd.f32 %v729, %v832
      %v834 = vpop.f32.mrf.mxu0
      %835 = vmatprep.mubr.bf16.mxu0 0
      %836 = vmatmul.mubr.bf16.gmra.mxu0 %v720
      %v837 = vpop.f32.mrf.mxu0
      %v838 = vadd.f32 %v729, %v837
      %v839 = vpop.f32.mrf.mxu0
      %v840 = vpop.f32.mrf.mxu0
      %v841 = vadd.f32 %v729, %v840
      %v842 = vpop.f32.mrf.mxu0
      %843 = vmatprep.mubr.bf16.mxu0 0
      %844 = vmatmul.mubr.bf16.gmra.mxu0 %v721
      %v845 = vpop.f32.mrf.mxu0
      %v846 = vadd.f32 %v729, %v845
      %v847 = vpop.f32.mrf.mxu0
      %v848 = vpop.f32.mrf.mxu0
      %v849 = vadd.f32 %v729, %v848
      %v850 = vpop.f32.mrf.mxu0
      %851 = vmatprep.mubr.bf16.mxu0 0
      %852 = vmatmul.mubr.bf16.gmra.mxu0 %v722
      %v853 = vpop.f32.mrf.mxu0
      %v854 = vadd.f32 %v729, %v853
      %v855 = vpop.f32.mrf.mxu0
      %v856 = vpop.f32.mrf.mxu0
      %v857 = vadd.f32 %v729, %v856
      %v858 = vpop.f32.mrf.mxu0
      %859 = vmatprep.mubr.bf16.mxu0 0
      %860 = vmatmul.mubr.bf16.gmra.mxu0 %v723
      %v861 = vpop.f32.mrf.mxu0
      %v862 = vadd.f32 %v729, %v861
      %v863 = vpop.f32.mrf.mxu0
      %v864 = vpop.f32.mrf.mxu0
      %v865 = vadd.f32 %v729, %v864
      %v866 = vpop.f32.mrf.mxu0
      %867 = vmatprep.mubr.bf16.mxu0 0
      %868 = vmatmul.mubr.bf16.gmra.mxu0 %v724
      %v869 = vpop.f32.mrf.mxu0
      %v870 = vadd.f32 %v729, %v869
      %v871 = vpop.f32.mrf.mxu0
      %v872 = vpop.f32.mrf.mxu0
      %v873 = vadd.f32 %v729, %v872
      %v874 = vpop.f32.mrf.mxu0
      %875 = vdwg.mxu0
      %v876 = vmax.f32 %v814, 0.0
      %v877 = vmax.f32 %v817, 0.0
      %v878 = vmax.f32 %v822, 0.0
      %v879 = vmax.f32 %v825, 0.0
      %v880 = vmax.f32 %v830, 0.0
      %v881 = vmax.f32 %v833, 0.0
      %v882 = vmax.f32 %v838, 0.0
      %v883 = vmax.f32 %v841, 0.0
      %v884 = vmax.f32 %v846, 0.0
      %v885 = vmax.f32 %v849, 0.0
      %v886 = vmax.f32 %v854, 0.0
      %v887 = vmax.f32 %v857, 0.0
      %v888 = vmax.f32 %v862, 0.0
      %v889 = vmax.f32 %v865, 0.0
      %v890 = vmax.f32 %v870, 0.0
      %v891 = vmax.f32 %v873, 0.0
      %v892 = vld [vmem:[%s5] sm:$0xf]
      %v893 = vld [vmem:[%s5 + $0x4] sm:$0xf]
      %v894 = vld [vmem:[%s5 + $0x8] sm:$0xf]
      %v895 = vld [vmem:[%s5 + $0xc] sm:$0xf]
      %v896 = vld [vmem:[%s5 + $0x10] sm:$0xf]
      %v897 = vld [vmem:[%s5 + $0x14] sm:$0xf]
      %v898 = vld [vmem:[%s5 + $0x18] sm:$0xf]
      %v899 = vld [vmem:[%s5 + $0x1c] sm:$0xf]
      %v900 = vld [vmem:[%s6] sm:$0x1]
      %v901 = vpack.c.bf16 %v877, %v876
      %v902 = vpack.c.bf16 %v879, %v878
      %v903 = vpack.c.bf16 %v881, %v880
      %v904 = vpack.c.bf16 %v883, %v882
      %v905 = vpack.c.bf16 %v885, %v884
      %v906 = vpack.c.bf16 %v887, %v886
      %v907 = vpack.c.bf16 %v889, %v888
      %v908 = vpack.c.bf16 %v891, %v890
      %v910 = vlaneseq
      %v911 = vshrl.u32 %v910, 7
      %v912 = vsub.s32 0, %v911
      %v913 = vrot.slane %v900, %v912
      %v923 = vunpack.c.l.b16 %v892
      %v924 = vunpack.c.l.b16 %v893
      %v925 = vunpack.c.l.b16 %v894
      %v926 = vunpack.c.l.b16 %v895
      %v927 = vunpack.c.l.b16 %v896
      %v928 = vunpack.c.l.b16 %v897
      %v929 = vunpack.c.l.b16 %v898
      %v930 = vunpack.c.l.b16 %v899
      %v931 = vpack.c.b16 %v924, %v923
      %v932 = vpack.c.b16 %v926, %v925
      %v933 = vpack.c.b16 %v928, %v927
      %v934 = vpack.c.b16 %v930, %v929
      %v940 = vsel %vm562, %v901, 0
      %v943 = vsel %vm562, %v902, 0
      %v946 = vsel %vm562, %v903, 0
      %v949 = vsel %vm562, %v904, 0
      %v952 = vsel %vm562, %v905, 0
      %v955 = vsel %vm562, %v906, 0
      %v958 = vsel %vm562, %v907, 0
      %v961 = vsel %vm562, %v908, 0
      %963 = vmatprep.subr.bf16.mxu0 0
      %964 = vmatpush1.bf16.msra.mxu0 0
      %965 = vmatprep.subr.bf16.mxu0 0
      %966 = vmatpush1.bf16.msra.mxu0 0
      %967 = vmatprep.subr.bf16.mxu0 0
      %968 = vmatpush1.bf16.msra.mxu0 0
      %969 = vmatprep.subr.bf16.mxu0 0
      %970 = vmatpush1.bf16.msra.mxu0 0
      %971 = vmatprep.subr.bf16.mxu0 0
      %972 = vmatpush1.bf16.msra.mxu0 %v934
      %973 = vmatprep.subr.bf16.mxu0 0
      %974 = vmatpush1.bf16.msra.mxu0 %v933
      %975 = vmatprep.subr.bf16.mxu0 0
      %976 = vmatpush1.bf16.msra.mxu0 %v932
      %977 = vmatprep.subr.bf16.mxu0 0
      %978 = vmatpush1.bf16.msra.mxu0 %v931
      %979 = vmatprep.subr.bf16.mxu0 0
      %980 = vmatpush2.bf16.msra.mxu0 0
      %981 = vmatprep.subr.bf16.mxu0 0
      %982 = vmatpush2.bf16.msra.mxu0 0
      %983 = vmatprep.subr.bf16.mxu0 0
      %984 = vmatpush2.bf16.msra.mxu0 0
      %985 = vmatprep.subr.bf16.mxu0 0
      %986 = vmatpush2.bf16.msra.mxu0 0
      %987 = vmatprep.subr.bf16.mxu0 0
      %988 = vmatpush2.bf16.msra.mxu0 0
      %989 = vmatprep.subr.bf16.mxu0 0
      %990 = vmatpush2.bf16.msra.mxu0 0
      %991 = vmatprep.subr.bf16.mxu0 0
      %992 = vmatpush2.bf16.msra.mxu0 0
      %993 = vmatprep.subr.bf16.mxu0 0
      %994 = vmatpush2.bf16.msra.mxu0 0
      %995 = vmatprep.mubr.bf16.mxu0 0
      %996 = vmatmul.mubr.bf16.gmra.mxu0 %v940
      %v997 = vpop.f32.mrf.mxu0
      %v998 = vadd.f32 %v913, %v997
      %v999 = vpop.f32.mrf.mxu0
      %v1000 = vpop.f32.mrf.mxu0
      %v1001 = vadd.f32 %v913, %v1000
      %v1002 = vpop.f32.mrf.mxu0
      %1003 = vmatprep.mubr.bf16.mxu0 0
      %1004 = vmatmul.mubr.bf16.gmra.mxu0 %v943
      %v1005 = vpop.f32.mrf.mxu0
      %v1006 = vadd.f32 %v913, %v1005
      %v1007 = vpop.f32.mrf.mxu0
      %v1008 = vpop.f32.mrf.mxu0
      %v1009 = vadd.f32 %v913, %v1008
      %v1010 = vpop.f32.mrf.mxu0
      %1011 = vmatprep.mubr.bf16.mxu0 0
      %1012 = vmatmul.mubr.bf16.gmra.mxu0 %v946
      %v1013 = vpop.f32.mrf.mxu0
      %v1014 = vadd.f32 %v913, %v1013
      %v1015 = vpop.f32.mrf.mxu0
      %v1016 = vpop.f32.mrf.mxu0
      %v1017 = vadd.f32 %v913, %v1016
      %v1018 = vpop.f32.mrf.mxu0
      %1019 = vmatprep.mubr.bf16.mxu0 0
      %1020 = vmatmul.mubr.bf16.gmra.mxu0 %v949
      %v1021 = vpop.f32.mrf.mxu0
      %v1022 = vadd.f32 %v913, %v1021
      %v1023 = vpop.f32.mrf.mxu0
      %v1024 = vpop.f32.mrf.mxu0
      %v1025 = vadd.f32 %v913, %v1024
      %v1026 = vpop.f32.mrf.mxu0
      %1027 = vmatprep.mubr.bf16.mxu0 0
      %1028 = vmatmul.mubr.bf16.gmra.mxu0 %v952
      %v1029 = vpop.f32.mrf.mxu0
      %v1030 = vadd.f32 %v913, %v1029
      %v1031 = vpop.f32.mrf.mxu0
      %v1032 = vpop.f32.mrf.mxu0
      %v1033 = vadd.f32 %v913, %v1032
      %v1034 = vpop.f32.mrf.mxu0
      %1035 = vmatprep.mubr.bf16.mxu0 0
      %1036 = vmatmul.mubr.bf16.gmra.mxu0 %v955
      %v1037 = vpop.f32.mrf.mxu0
      %v1038 = vadd.f32 %v913, %v1037
      %v1039 = vpop.f32.mrf.mxu0
      %v1040 = vpop.f32.mrf.mxu0
      %v1041 = vadd.f32 %v913, %v1040
      %v1042 = vpop.f32.mrf.mxu0
      %1043 = vmatprep.mubr.bf16.mxu0 0
      %1044 = vmatmul.mubr.bf16.gmra.mxu0 %v958
      %v1045 = vpop.f32.mrf.mxu0
      %v1046 = vadd.f32 %v913, %v1045
      %v1047 = vpop.f32.mrf.mxu0
      %v1048 = vpop.f32.mrf.mxu0
      %v1049 = vadd.f32 %v913, %v1048
      %v1050 = vpop.f32.mrf.mxu0
      %1051 = vmatprep.mubr.bf16.mxu0 0
      %1052 = vmatmul.mubr.bf16.gmra.mxu0 %v961
      %v1053 = vpop.f32.mrf.mxu0
      %v1054 = vadd.f32 %v913, %v1053
      %v1055 = vpop.f32.mrf.mxu0
      %v1056 = vpop.f32.mrf.mxu0
      %v1057 = vadd.f32 %v913, %v1056
      %v1058 = vpop.f32.mrf.mxu0
      %1059 = vdwg.mxu0
      %v1060 = vmax.f32 %v998, 0.0
      %v1061 = vmax.f32 %v1001, 0.0
      %v1062 = vmax.f32 %v1006, 0.0
      %v1063 = vmax.f32 %v1009, 0.0
      %v1064 = vmax.f32 %v1014, 0.0
      %v1065 = vmax.f32 %v1017, 0.0
      %v1066 = vmax.f32 %v1022, 0.0
      %v1067 = vmax.f32 %v1025, 0.0
      %v1068 = vmax.f32 %v1030, 0.0
      %v1069 = vmax.f32 %v1033, 0.0
      %v1070 = vmax.f32 %v1038, 0.0
      %v1071 = vmax.f32 %v1041, 0.0
      %v1072 = vmax.f32 %v1046, 0.0
      %v1073 = vmax.f32 %v1049, 0.0
      %v1074 = vmax.f32 %v1054, 0.0
      %v1075 = vmax.f32 %v1057, 0.0
      %v1076 = vld [vmem:[%s7] sm:$0xf]
      %v1077 = vld [vmem:[%s7 + $0x4] sm:$0xf]
      %v1078 = vld [vmem:[%s7 + $0x8] sm:$0xf]
      %v1079 = vld [vmem:[%s7 + $0xc] sm:$0xf]
      %v1080 = vld [vmem:[%s8] sm:$0x1]
      %v1081 = vpack.c.bf16 %v1061, %v1060
      %v1082 = vpack.c.bf16 %v1063, %v1062
      %v1083 = vpack.c.bf16 %v1065, %v1064
      %v1084 = vpack.c.bf16 %v1067, %v1066
      %v1085 = vpack.c.bf16 %v1069, %v1068
      %v1086 = vpack.c.bf16 %v1071, %v1070
      %v1087 = vpack.c.bf16 %v1073, %v1072
      %v1088 = vpack.c.bf16 %v1075, %v1074
      %v1090 = vlaneseq
      %v1091 = vshrl.u32 %v1090, 7
      %v1092 = vsub.s32 0, %v1091
      %v1093 = vrot.slane %v1080, %v1092
      %v1099 = vunpack.c.l.b16 %v1076
      %v1100 = vunpack.c.l.b16 %v1077
      %v1101 = vunpack.c.l.b16 %v1078
      %v1102 = vunpack.c.l.b16 %v1079
      %v1103 = vpack.c.b16 %v1100, %v1099
      %v1104 = vpack.c.b16 %v1102, %v1101
      %vm1107 = vcmask 261120
      %v1109 = vsel %vm1107, %v1081, 0
      %v1112 = vsel %vm1107, %v1082, 0
      %v1115 = vsel %vm1107, %v1083, 0
      %v1118 = vsel %vm1107, %v1084, 0
      %v1121 = vsel %vm1107, %v1085, 0
      %v1124 = vsel %vm1107, %v1086, 0
      %v1127 = vsel %vm1107, %v1087, 0
      %v1130 = vsel %vm1107, %v1088, 0
      %1132 = vmatprep.subr.bf16.mxu0 0
      %1133 = vmatpush1.bf16.msra.mxu0 0
      %1134 = vmatprep.subr.bf16.mxu0 0
      %1135 = vmatpush1.bf16.msra.mxu0 0
      %1136 = vmatprep.subr.bf16.mxu0 0
      %1137 = vmatpush1.bf16.msra.mxu0 0
      %1138 = vmatprep.subr.bf16.mxu0 0
      %1139 = vmatpush1.bf16.msra.mxu0 0
      %1140 = vmatprep.subr.bf16.mxu0 0
      %1141 = vmatpush1.bf16.msra.mxu0 0
      %1142 = vmatprep.subr.bf16.mxu0 0
      %1143 = vmatpush1.bf16.msra.mxu0 0
      %1144 = vmatprep.subr.bf16.mxu0 0
      %1145 = vmatpush1.bf16.msra.mxu0 %v1104
      %1146 = vmatprep.subr.bf16.mxu0 0
      %1147 = vmatpush1.bf16.msra.mxu0 %v1103
      %1148 = vmatprep.subr.bf16.mxu0 0
      %1149 = vmatpush2.bf16.msra.mxu0 0
      %1150 = vmatprep.subr.bf16.mxu0 0
      %1151 = vmatpush2.bf16.msra.mxu0 0
      %1152 = vmatprep.subr.bf16.mxu0 0
      %1153 = vmatpush2.bf16.msra.mxu0 0
      %1154 = vmatprep.subr.bf16.mxu0 0
      %1155 = vmatpush2.bf16.msra.mxu0 0
      %1156 = vmatprep.subr.bf16.mxu0 0
      %1157 = vmatpush2.bf16.msra.mxu0 0
      %1158 = vmatprep.subr.bf16.mxu0 0
      %1159 = vmatpush2.bf16.msra.mxu0 0
      %1160 = vmatprep.subr.bf16.mxu0 0
      %1161 = vmatpush2.bf16.msra.mxu0 0
      %1162 = vmatprep.subr.bf16.mxu0 0
      %1163 = vmatpush2.bf16.msra.mxu0 0
      %1164 = vmatprep.mubr.bf16.mxu0 0
      %1165 = vmatmul.mubr.bf16.gmra.mxu0 %v1109
      %v1166 = vpop.f32.mrf.mxu0
      %v1167 = vadd.f32 %v1093, %v1166
      %v1168 = vpop.f32.mrf.mxu0
      %v1169 = vpop.f32.mrf.mxu0
      %v1170 = vadd.f32 %v1093, %v1169
      %v1171 = vpop.f32.mrf.mxu0
      %1172 = vmatprep.mubr.bf16.mxu0 0
      %1173 = vmatmul.mubr.bf16.gmra.mxu0 %v1112
      %v1174 = vpop.f32.mrf.mxu0
      %v1175 = vadd.f32 %v1093, %v1174
      %v1176 = vpop.f32.mrf.mxu0
      %v1177 = vpop.f32.mrf.mxu0
      %v1178 = vadd.f32 %v1093, %v1177
      %v1179 = vpop.f32.mrf.mxu0
      %1180 = vmatprep.mubr.bf16.mxu0 0
      %1181 = vmatmul.mubr.bf16.gmra.mxu0 %v1115
      %v1182 = vpop.f32.mrf.mxu0
      %v1183 = vadd.f32 %v1093, %v1182
      %v1184 = vpop.f32.mrf.mxu0
      %v1185 = vpop.f32.mrf.mxu0
      %v1186 = vadd.f32 %v1093, %v1185
      %v1187 = vpop.f32.mrf.mxu0
      %1188 = vmatprep.mubr.bf16.mxu0 0
      %1189 = vmatmul.mubr.bf16.gmra.mxu0 %v1118
      %v1190 = vpop.f32.mrf.mxu0
      %v1191 = vadd.f32 %v1093, %v1190
      %v1192 = vpop.f32.mrf.mxu0
      %v1193 = vpop.f32.mrf.mxu0
      %v1194 = vadd.f32 %v1093, %v1193
      %v1195 = vpop.f32.mrf.mxu0
      %1196 = vmatprep.mubr.bf16.mxu0 0
      %1197 = vmatmul.mubr.bf16.gmra.mxu0 %v1121
      %v1198 = vpop.f32.mrf.mxu0
      %v1199 = vadd.f32 %v1093, %v1198
      %v1200 = vpop.f32.mrf.mxu0
      %v1201 = vpop.f32.mrf.mxu0
      %v1202 = vadd.f32 %v1093, %v1201
      %v1203 = vpop.f32.mrf.mxu0
      %1204 = vmatprep.mubr.bf16.mxu0 0
      %1205 = vmatmul.mubr.bf16.gmra.mxu0 %v1124
      %v1206 = vpop.f32.mrf.mxu0
      %v1207 = vadd.f32 %v1093, %v1206
      %v1208 = vpop.f32.mrf.mxu0
      %v1209 = vpop.f32.mrf.mxu0
      %v1210 = vadd.f32 %v1093, %v1209
      %v1211 = vpop.f32.mrf.mxu0
      %1212 = vmatprep.mubr.bf16.mxu0 0
      %1213 = vmatmul.mubr.bf16.gmra.mxu0 %v1127
      %v1214 = vpop.f32.mrf.mxu0
      %v1215 = vadd.f32 %v1093, %v1214
      %v1216 = vpop.f32.mrf.mxu0
      %v1217 = vpop.f32.mrf.mxu0
      %v1218 = vadd.f32 %v1093, %v1217
      %v1219 = vpop.f32.mrf.mxu0
      %1220 = vmatprep.mubr.bf16.mxu0 0
      %1221 = vmatmul.mubr.bf16.gmra.mxu0 %v1130
      %v1222 = vpop.f32.mrf.mxu0
      %v1223 = vadd.f32 %v1093, %v1222
      %v1224 = vpop.f32.mrf.mxu0
      %v1225 = vpop.f32.mrf.mxu0
      %v1226 = vadd.f32 %v1093, %v1225
      %v1227 = vpop.f32.mrf.mxu0
      %1228 = vdwg.mxu0
      %v1229 = vmax.f32 %v1167, 0.0
      %v1230 = vmax.f32 %v1170, 0.0
      %v1231 = vmax.f32 %v1175, 0.0
      %v1232 = vmax.f32 %v1178, 0.0
      %v1233 = vmax.f32 %v1183, 0.0
      %v1234 = vmax.f32 %v1186, 0.0
      %v1235 = vmax.f32 %v1191, 0.0
      %v1236 = vmax.f32 %v1194, 0.0
      %v1237 = vmax.f32 %v1199, 0.0
      %v1238 = vmax.f32 %v1202, 0.0
      %v1239 = vmax.f32 %v1207, 0.0
      %v1240 = vmax.f32 %v1210, 0.0
      %v1241 = vmax.f32 %v1215, 0.0
      %v1242 = vmax.f32 %v1218, 0.0
      %v1243 = vmax.f32 %v1223, 0.0
      %v1244 = vmax.f32 %v1226, 0.0
      %v1245 = vld [vmem:[%s9] sm:$0xf]
      %v1246 = vld [vmem:[%s9 + $0x4] sm:$0xf]
      %v1247 = vld [vmem:[%s9 + $0x8] sm:$0xf]
      %v1248 = vld [vmem:[%s9 + $0xc] sm:$0xf]
      %v1249 = vld [vmem:[%s10] sm:$0x1]
      %v1250 = vpack.c.bf16 %v1230, %v1229
      %v1251 = vpack.c.bf16 %v1232, %v1231
      %v1252 = vpack.c.bf16 %v1234, %v1233
      %v1253 = vpack.c.bf16 %v1236, %v1235
      %v1254 = vpack.c.bf16 %v1238, %v1237
      %v1255 = vpack.c.bf16 %v1240, %v1239
      %v1256 = vpack.c.bf16 %v1242, %v1241
      %v1257 = vpack.c.bf16 %v1244, %v1243
      %v1259 = vlaneseq
      %v1260 = vshrl.u32 %v1259, 7
      %v1261 = vsub.s32 0, %v1260
      %v1262 = vrot.slane %v1249, %v1261
      %v1268 = vunpack.c.l.b16 %v1245
      %v1269 = vunpack.c.l.b16 %v1246
      %v1270 = vunpack.c.l.b16 %v1247
      %v1271 = vunpack.c.l.b16 %v1248
      %v1272 = vpack.c.b16 %v1269, %v1268
      %v1273 = vpack.c.b16 %v1271, %v1270
      %v1277 = vsel %vm1107, %v1250, 0
      %v1280 = vsel %vm1107, %v1251, 0
      %v1283 = vsel %vm1107, %v1252, 0
      %v1286 = vsel %vm1107, %v1253, 0
      %v1289 = vsel %vm1107, %v1254, 0
      %v1292 = vsel %vm1107, %v1255, 0
      %v1295 = vsel %vm1107, %v1256, 0
      %v1298 = vsel %vm1107, %v1257, 0
      %1300 = vmatprep.subr.bf16.mxu0 0
      %1301 = vmatpush1.bf16.msra.mxu0 0
      %1302 = vmatprep.subr.bf16.mxu0 0
      %1303 = vmatpush1.bf16.msra.mxu0 0
      %1304 = vmatprep.subr.bf16.mxu0 0
      %1305 = vmatpush1.bf16.msra.mxu0 0
      %1306 = vmatprep.subr.bf16.mxu0 0
      %1307 = vmatpush1.bf16.msra.mxu0 0
      %1308 = vmatprep.subr.bf16.mxu0 0
      %1309 = vmatpush1.bf16.msra.mxu0 0
      %1310 = vmatprep.subr.bf16.mxu0 0
      %1311 = vmatpush1.bf16.msra.mxu0 0
      %1312 = vmatprep.subr.bf16.mxu0 0
      %1313 = vmatpush1.bf16.msra.mxu0 %v1273
      %1314 = vmatprep.subr.bf16.mxu0 0
      %1315 = vmatpush1.bf16.msra.mxu0 %v1272
      %1316 = vmatprep.subr.bf16.mxu0 0
      %1317 = vmatpush2.bf16.msra.mxu0 0
      %1318 = vmatprep.subr.bf16.mxu0 0
      %1319 = vmatpush2.bf16.msra.mxu0 0
      %1320 = vmatprep.subr.bf16.mxu0 0
      %1321 = vmatpush2.bf16.msra.mxu0 0
      %1322 = vmatprep.subr.bf16.mxu0 0
      %1323 = vmatpush2.bf16.msra.mxu0 0
      %1324 = vmatprep.subr.bf16.mxu0 0
      %1325 = vmatpush2.bf16.msra.mxu0 0
      %1326 = vmatprep.subr.bf16.mxu0 0
      %1327 = vmatpush2.bf16.msra.mxu0 0
      %1328 = vmatprep.subr.bf16.mxu0 0
      %1329 = vmatpush2.bf16.msra.mxu0 0
      %1330 = vmatprep.subr.bf16.mxu0 0
      %1331 = vmatpush2.bf16.msra.mxu0 0
      %1332 = vmatprep.mubr.bf16.mxu0 0
      %1333 = vmatmul.mubr.bf16.gmra.mxu0 %v1277
      %v1334 = vpop.f32.mrf.mxu0
      %v1335 = vadd.f32 %v1262, %v1334
      %v1336 = vpop.f32.mrf.mxu0
      %v1337 = vpop.f32.mrf.mxu0
      %v1338 = vadd.f32 %v1262, %v1337
      %v1339 = vpop.f32.mrf.mxu0
      %1340 = vmatprep.mubr.bf16.mxu0 0
      %1341 = vmatmul.mubr.bf16.gmra.mxu0 %v1280
      %v1342 = vpop.f32.mrf.mxu0
      %v1343 = vadd.f32 %v1262, %v1342
      %v1344 = vpop.f32.mrf.mxu0
      %v1345 = vpop.f32.mrf.mxu0
      %v1346 = vadd.f32 %v1262, %v1345
      %v1347 = vpop.f32.mrf.mxu0
      %1348 = vmatprep.mubr.bf16.mxu0 0
      %1349 = vmatmul.mubr.bf16.gmra.mxu0 %v1283
      %v1350 = vpop.f32.mrf.mxu0
      %v1351 = vadd.f32 %v1262, %v1350
      %v1352 = vpop.f32.mrf.mxu0
      %v1353 = vpop.f32.mrf.mxu0
      %v1354 = vadd.f32 %v1262, %v1353
      %v1355 = vpop.f32.mrf.mxu0
      %1356 = vmatprep.mubr.bf16.mxu0 0
      %1357 = vmatmul.mubr.bf16.gmra.mxu0 %v1286
      %v1358 = vpop.f32.mrf.mxu0
      %v1359 = vadd.f32 %v1262, %v1358
      %v1360 = vpop.f32.mrf.mxu0
      %v1361 = vpop.f32.mrf.mxu0
      %v1362 = vadd.f32 %v1262, %v1361
      %v1363 = vpop.f32.mrf.mxu0
      %1364 = vmatprep.mubr.bf16.mxu0 0
      %1365 = vmatmul.mubr.bf16.gmra.mxu0 %v1289
      %v1366 = vpop.f32.mrf.mxu0
      %v1367 = vadd.f32 %v1262, %v1366
      %v1368 = vpop.f32.mrf.mxu0
      %v1369 = vpop.f32.mrf.mxu0
      %v1370 = vadd.f32 %v1262, %v1369
      %v1371 = vpop.f32.mrf.mxu0
      %1372 = vmatprep.mubr.bf16.mxu0 0
      %1373 = vmatmul.mubr.bf16.gmra.mxu0 %v1292
      %v1374 = vpop.f32.mrf.mxu0
      %v1375 = vadd.f32 %v1262, %v1374
      %v1376 = vpop.f32.mrf.mxu0
      %v1377 = vpop.f32.mrf.mxu0
      %v1378 = vadd.f32 %v1262, %v1377
      %v1379 = vpop.f32.mrf.mxu0
      %1380 = vmatprep.mubr.bf16.mxu0 0
      %1381 = vmatmul.mubr.bf16.gmra.mxu0 %v1295
      %v1382 = vpop.f32.mrf.mxu0
      %v1383 = vadd.f32 %v1262, %v1382
      %v1384 = vpop.f32.mrf.mxu0
      %v1385 = vpop.f32.mrf.mxu0
      %v1386 = vadd.f32 %v1262, %v1385
      %v1387 = vpop.f32.mrf.mxu0
      %1388 = vmatprep.mubr.bf16.mxu0 0
      %1389 = vmatmul.mubr.bf16.gmra.mxu0 %v1298
      %v1390 = vpop.f32.mrf.mxu0
      %v1391 = vadd.f32 %v1262, %v1390
      %v1392 = vpop.f32.mrf.mxu0
      %v1393 = vpop.f32.mrf.mxu0
      %v1394 = vadd.f32 %v1262, %v1393
      %v1395 = vpop.f32.mrf.mxu0
      %1396 = vdwg.mxu0
      %v1397 = vmax.f32 %v1335, 0.0
      %v1398 = vmax.f32 %v1338, 0.0
      %v1399 = vmax.f32 %v1343, 0.0
      %v1400 = vmax.f32 %v1346, 0.0
      %v1401 = vmax.f32 %v1351, 0.0
      %v1402 = vmax.f32 %v1354, 0.0
      %v1403 = vmax.f32 %v1359, 0.0
      %v1404 = vmax.f32 %v1362, 0.0
      %v1405 = vmax.f32 %v1367, 0.0
      %v1406 = vmax.f32 %v1370, 0.0
      %v1407 = vmax.f32 %v1375, 0.0
      %v1408 = vmax.f32 %v1378, 0.0
      %v1409 = vmax.f32 %v1383, 0.0
      %v1410 = vmax.f32 %v1386, 0.0
      %v1411 = vmax.f32 %v1391, 0.0
      %v1412 = vmax.f32 %v1394, 0.0
      %v1413 = vld [vmem:[%s11] sm:$0xf]
      %v1414 = vld [vmem:[%s11 + $0x4] sm:$0xf]
      %v1415 = vld [vmem:[%s11 + $0x8] sm:$0xf]
      %v1416 = vld [vmem:[%s11 + $0xc] sm:$0xf]
      %v1417 = vld [vmem:[%s11 + $0x10] sm:$0xf]
      %v1418 = vld [vmem:[%s11 + $0x14] sm:$0xf]
      %v1419 = vld [vmem:[%s11 + $0x18] sm:$0xf]
      %v1420 = vld [vmem:[%s11 + $0x1c] sm:$0xf]
      %v1421 = vld [vmem:[%s12] sm:$0x1]
      %v1422 = vpack.c.bf16 %v1398, %v1397
      %v1423 = vpack.c.bf16 %v1400, %v1399
      %v1424 = vpack.c.bf16 %v1402, %v1401
      %v1425 = vpack.c.bf16 %v1404, %v1403
      %v1426 = vpack.c.bf16 %v1406, %v1405
      %v1427 = vpack.c.bf16 %v1408, %v1407
      %v1428 = vpack.c.bf16 %v1410, %v1409
      %v1429 = vpack.c.bf16 %v1412, %v1411
      %v1431 = vlaneseq
      %v1432 = vshrl.u32 %v1431, 7
      %v1433 = vsub.s32 0, %v1432
      %v1434 = vrot.slane %v1421, %v1433
      %v1444 = vunpack.c.l.b16 %v1413
      %v1445 = vunpack.c.l.b16 %v1414
      %v1446 = vunpack.c.l.b16 %v1415
      %v1447 = vunpack.c.l.b16 %v1416
      %v1448 = vunpack.c.l.b16 %v1417
      %v1449 = vunpack.c.l.b16 %v1418
      %v1450 = vunpack.c.l.b16 %v1419
      %v1451 = vunpack.c.l.b16 %v1420
      %v1452 = vpack.c.b16 %v1445, %v1444
      %v1453 = vpack.c.b16 %v1447, %v1446
      %v1454 = vpack.c.b16 %v1449, %v1448
      %v1455 = vpack.c.b16 %v1451, %v1450
      %v1461 = vsel %vm562, %v1422, 0
      %v1464 = vsel %vm562, %v1423, 0
      %v1467 = vsel %vm562, %v1424, 0
      %v1470 = vsel %vm562, %v1425, 0
      %v1473 = vsel %vm562, %v1426, 0
      %v1476 = vsel %vm562, %v1427, 0
      %v1479 = vsel %vm562, %v1428, 0
      %v1482 = vsel %vm562, %v1429, 0
      %1484 = vmatprep.subr.bf16.mxu0 0
      %1485 = vmatpush1.bf16.msra.mxu0 0
      %1486 = vmatprep.subr.bf16.mxu0 0
      %1487 = vmatpush1.bf16.msra.mxu0 0
      %1488 = vmatprep.subr.bf16.mxu0 0
      %1489 = vmatpush1.bf16.msra.mxu0 0
      %1490 = vmatprep.subr.bf16.mxu0 0
      %1491 = vmatpush1.bf16.msra.mxu0 0
      %1492 = vmatprep.subr.bf16.mxu0 0
      %1493 = vmatpush1.bf16.msra.mxu0 %v1455
      %1494 = vmatprep.subr.bf16.mxu0 0
      %1495 = vmatpush1.bf16.msra.mxu0 %v1454
      %1496 = vmatprep.subr.bf16.mxu0 0
      %1497 = vmatpush1.bf16.msra.mxu0 %v1453
      %1498 = vmatprep.subr.bf16.mxu0 0
      %1499 = vmatpush1.bf16.msra.mxu0 %v1452
      %1500 = vmatprep.subr.bf16.mxu0 0
      %1501 = vmatpush2.bf16.msra.mxu0 0
      %1502 = vmatprep.subr.bf16.mxu0 0
      %1503 = vmatpush2.bf16.msra.mxu0 0
      %1504 = vmatprep.subr.bf16.mxu0 0
      %1505 = vmatpush2.bf16.msra.mxu0 0
      %1506 = vmatprep.subr.bf16.mxu0 0
      %1507 = vmatpush2.bf16.msra.mxu0 0
      %1508 = vmatprep.subr.bf16.mxu0 0
      %1509 = vmatpush2.bf16.msra.mxu0 0
      %1510 = vmatprep.subr.bf16.mxu0 0
      %1511 = vmatpush2.bf16.msra.mxu0 0
      %1512 = vmatprep.subr.bf16.mxu0 0
      %1513 = vmatpush2.bf16.msra.mxu0 0
      %1514 = vmatprep.subr.bf16.mxu0 0
      %1515 = vmatpush2.bf16.msra.mxu0 0
      %1516 = vmatprep.mubr.bf16.mxu0 0
      %1517 = vmatmul.mubr.bf16.gmra.mxu0 %v1461
      %v1518 = vpop.f32.mrf.mxu0
      %v1519 = vadd.f32 %v1434, %v1518
      %v1520 = vpop.f32.mrf.mxu0
      %v1521 = vpop.f32.mrf.mxu0
      %v1522 = vadd.f32 %v1434, %v1521
      %v1523 = vpop.f32.mrf.mxu0
      %1524 = vmatprep.mubr.bf16.mxu0 0
      %1525 = vmatmul.mubr.bf16.gmra.mxu0 %v1464
      %v1526 = vpop.f32.mrf.mxu0
      %v1527 = vadd.f32 %v1434, %v1526
      %v1528 = vpop.f32.mrf.mxu0
      %v1529 = vpop.f32.mrf.mxu0
      %v1530 = vadd.f32 %v1434, %v1529
      %v1531 = vpop.f32.mrf.mxu0
      %1532 = vmatprep.mubr.bf16.mxu0 0
      %1533 = vmatmul.mubr.bf16.gmra.mxu0 %v1467
      %v1534 = vpop.f32.mrf.mxu0
      %v1535 = vadd.f32 %v1434, %v1534
      %v1536 = vpop.f32.mrf.mxu0
      %v1537 = vpop.f32.mrf.mxu0
      %v1538 = vadd.f32 %v1434, %v1537
      %v1539 = vpop.f32.mrf.mxu0
      %1540 = vmatprep.mubr.bf16.mxu0 0
      %1541 = vmatmul.mubr.bf16.gmra.mxu0 %v1470
      %v1542 = vpop.f32.mrf.mxu0
      %v1543 = vadd.f32 %v1434, %v1542
      %v1544 = vpop.f32.mrf.mxu0
      %v1545 = vpop.f32.mrf.mxu0
      %v1546 = vadd.f32 %v1434, %v1545
      %v1547 = vpop.f32.mrf.mxu0
      %1548 = vmatprep.mubr.bf16.mxu0 0
      %1549 = vmatmul.mubr.bf16.gmra.mxu0 %v1473
      %v1550 = vpop.f32.mrf.mxu0
      %v1551 = vadd.f32 %v1434, %v1550
      %v1552 = vpop.f32.mrf.mxu0
      %v1553 = vpop.f32.mrf.mxu0
      %v1554 = vadd.f32 %v1434, %v1553
      %v1555 = vpop.f32.mrf.mxu0
      %1556 = vmatprep.mubr.bf16.mxu0 0
      %1557 = vmatmul.mubr.bf16.gmra.mxu0 %v1476
      %v1558 = vpop.f32.mrf.mxu0
      %v1559 = vadd.f32 %v1434, %v1558
      %v1560 = vpop.f32.mrf.mxu0
      %v1561 = vpop.f32.mrf.mxu0
      %v1562 = vadd.f32 %v1434, %v1561
      %v1563 = vpop.f32.mrf.mxu0
      %1564 = vmatprep.mubr.bf16.mxu0 0
      %1565 = vmatmul.mubr.bf16.gmra.mxu0 %v1479
      %v1566 = vpop.f32.mrf.mxu0
      %v1567 = vadd.f32 %v1434, %v1566
      %v1568 = vpop.f32.mrf.mxu0
      %v1569 = vpop.f32.mrf.mxu0
      %v1570 = vadd.f32 %v1434, %v1569
      %v1571 = vpop.f32.mrf.mxu0
      %1572 = vmatprep.mubr.bf16.mxu0 0
      %1573 = vmatmul.mubr.bf16.gmra.mxu0 %v1482
      %v1574 = vpop.f32.mrf.mxu0
      %v1575 = vadd.f32 %v1434, %v1574
      %v1576 = vpop.f32.mrf.mxu0
      %v1577 = vpop.f32.mrf.mxu0
      %v1578 = vadd.f32 %v1434, %v1577
      %v1579 = vpop.f32.mrf.mxu0
      %1580 = vdwg.mxu0
      %v1581 = vmax.f32 %v1519, 0.0
      %v1582 = vmax.f32 %v1522, 0.0
      %v1583 = vmax.f32 %v1527, 0.0
      %v1584 = vmax.f32 %v1530, 0.0
      %v1585 = vmax.f32 %v1535, 0.0
      %v1586 = vmax.f32 %v1538, 0.0
      %v1587 = vmax.f32 %v1543, 0.0
      %v1588 = vmax.f32 %v1546, 0.0
      %v1589 = vmax.f32 %v1551, 0.0
      %v1590 = vmax.f32 %v1554, 0.0
      %v1591 = vmax.f32 %v1559, 0.0
      %v1592 = vmax.f32 %v1562, 0.0
      %v1593 = vmax.f32 %v1567, 0.0
      %v1594 = vmax.f32 %v1570, 0.0
      %v1595 = vmax.f32 %v1575, 0.0
      %v1596 = vmax.f32 %v1578, 0.0
      %v1597 = vld [vmem:[%s13] sm:$0xf]
      %v1598 = vld [vmem:[%s13 + $0x4] sm:$0xf]
      %v1599 = vld [vmem:[%s13 + $0x8] sm:$0xf]
      %v1600 = vld [vmem:[%s13 + $0xc] sm:$0xf]
      %v1601 = vld [vmem:[%s13 + $0x10] sm:$0xf]
      %v1602 = vld [vmem:[%s13 + $0x14] sm:$0xf]
      %v1603 = vld [vmem:[%s13 + $0x18] sm:$0xf]
      %v1604 = vld [vmem:[%s13 + $0x1c] sm:$0xf]
      %v1605 = vld [vmem:[%s13 + $0x20] sm:$0xf]
      %v1606 = vld [vmem:[%s13 + $0x24] sm:$0xf]
      %v1607 = vld [vmem:[%s13 + $0x28] sm:$0xf]
      %v1608 = vld [vmem:[%s13 + $0x2c] sm:$0xf]
      %v1609 = vld [vmem:[%s13 + $0x30] sm:$0xf]
      %v1610 = vld [vmem:[%s13 + $0x34] sm:$0xf]
      %v1611 = vld [vmem:[%s13 + $0x38] sm:$0xf]
      %v1612 = vld [vmem:[%s13 + $0x3c] sm:$0xf]
      %v1613 = vld [vmem:[%s14] sm:$0x1]
      %v1614 = vpack.c.bf16 %v1582, %v1581
      %v1615 = vpack.c.bf16 %v1584, %v1583
      %v1616 = vpack.c.bf16 %v1586, %v1585
      %v1617 = vpack.c.bf16 %v1588, %v1587
      %v1618 = vpack.c.bf16 %v1590, %v1589
      %v1619 = vpack.c.bf16 %v1592, %v1591
      %v1620 = vpack.c.bf16 %v1594, %v1593
      %v1621 = vpack.c.bf16 %v1596, %v1595
      %v1623 = vlaneseq
      %v1624 = vshrl.u32 %v1623, 7
      %v1625 = vsub.s32 0, %v1624
      %v1626 = vrot.slane %v1613, %v1625
      %v1644 = vunpack.c.l.b16 %v1597
      %v1645 = vunpack.c.l.b16 %v1598
      %v1646 = vunpack.c.l.b16 %v1599
      %v1647 = vunpack.c.l.b16 %v1600
      %v1648 = vunpack.c.l.b16 %v1601
      %v1649 = vunpack.c.l.b16 %v1602
      %v1650 = vunpack.c.l.b16 %v1603
      %v1651 = vunpack.c.l.b16 %v1604
      %v1652 = vunpack.c.l.b16 %v1605
      %v1653 = vunpack.c.l.b16 %v1606
      %v1654 = vunpack.c.l.b16 %v1607
      %v1655 = vunpack.c.l.b16 %v1608
      %v1656 = vunpack.c.l.b16 %v1609
      %v1657 = vunpack.c.l.b16 %v1610
      %v1658 = vunpack.c.l.b16 %v1611
      %v1659 = vunpack.c.l.b16 %v1612
      %v1660 = vpack.c.b16 %v1645, %v1644
      %v1661 = vpack.c.b16 %v1647, %v1646
      %v1662 = vpack.c.b16 %v1649, %v1648
      %v1663 = vpack.c.b16 %v1651, %v1650
      %v1664 = vpack.c.b16 %v1653, %v1652
      %v1665 = vpack.c.b16 %v1655, %v1654
      %v1666 = vpack.c.b16 %v1657, %v1656
      %v1667 = vpack.c.b16 %v1659, %v1658
      %1676 = vmatprep.subr.bf16.mxu0 0
      %1677 = vmatpush1.bf16.msra.mxu0 %v1667
      %1678 = vmatprep.subr.bf16.mxu0 0
      %1679 = vmatpush1.bf16.msra.mxu0 %v1666
      %1680 = vmatprep.subr.bf16.mxu0 0
      %1681 = vmatpush1.bf16.msra.mxu0 %v1665
      %1682 = vmatprep.subr.bf16.mxu0 0
      %1683 = vmatpush1.bf16.msra.mxu0 %v1664
      %1684 = vmatprep.subr.bf16.mxu0 0
      %1685 = vmatpush1.bf16.msra.mxu0 %v1663
      %1686 = vmatprep.subr.bf16.mxu0 0
      %1687 = vmatpush1.bf16.msra.mxu0 %v1662
      %1688 = vmatprep.subr.bf16.mxu0 0
      %1689 = vmatpush1.bf16.msra.mxu0 %v1661
      %1690 = vmatprep.subr.bf16.mxu0 0
      %1691 = vmatpush1.bf16.msra.mxu0 %v1660
      %1692 = vmatprep.subr.bf16.mxu0 0
      %1693 = vmatpush2.bf16.msra.mxu0 0
      %1694 = vmatprep.subr.bf16.mxu0 0
      %1695 = vmatpush2.bf16.msra.mxu0 0
      %1696 = vmatprep.subr.bf16.mxu0 0
      %1697 = vmatpush2.bf16.msra.mxu0 0
      %1698 = vmatprep.subr.bf16.mxu0 0
      %1699 = vmatpush2.bf16.msra.mxu0 0
      %1700 = vmatprep.subr.bf16.mxu0 0
      %1701 = vmatpush2.bf16.msra.mxu0 0
      %1702 = vmatprep.subr.bf16.mxu0 0
      %1703 = vmatpush2.bf16.msra.mxu0 0
      %1704 = vmatprep.subr.bf16.mxu0 0
      %1705 = vmatpush2.bf16.msra.mxu0 0
      %1706 = vmatprep.subr.bf16.mxu0 0
      %1707 = vmatpush2.bf16.msra.mxu0 0
      %1708 = vmatprep.mubr.bf16.mxu0 0
      %1709 = vmatmul.mubr.bf16.gmra.mxu0 %v1614
      %v1710 = vpop.f32.mrf.mxu0
      %v1711 = vadd.f32 %v1626, %v1710
      %v1712 = vpop.f32.mrf.mxu0
      %v1713 = vpop.f32.mrf.mxu0
      %v1714 = vadd.f32 %v1626, %v1713
      %v1715 = vpop.f32.mrf.mxu0
      %1716 = vmatprep.mubr.bf16.mxu0 0
      %1717 = vmatmul.mubr.bf16.gmra.mxu0 %v1615
      %v1718 = vpop.f32.mrf.mxu0
      %v1719 = vadd.f32 %v1626, %v1718
      %v1720 = vpop.f32.mrf.mxu0
      %v1721 = vpop.f32.mrf.mxu0
      %v1722 = vadd.f32 %v1626, %v1721
      %v1723 = vpop.f32.mrf.mxu0
      %1724 = vmatprep.mubr.bf16.mxu0 0
      %1725 = vmatmul.mubr.bf16.gmra.mxu0 %v1616
      %v1726 = vpop.f32.mrf.mxu0
      %v1727 = vadd.f32 %v1626, %v1726
      %v1728 = vpop.f32.mrf.mxu0
      %v1729 = vpop.f32.mrf.mxu0
      %v1730 = vadd.f32 %v1626, %v1729
      %v1731 = vpop.f32.mrf.mxu0
      %1732 = vmatprep.mubr.bf16.mxu0 0
      %1733 = vmatmul.mubr.bf16.gmra.mxu0 %v1617
      %v1734 = vpop.f32.mrf.mxu0
      %v1735 = vadd.f32 %v1626, %v1734
      %v1736 = vpop.f32.mrf.mxu0
      %v1737 = vpop.f32.mrf.mxu0
      %v1738 = vadd.f32 %v1626, %v1737
      %v1739 = vpop.f32.mrf.mxu0
      %1740 = vmatprep.mubr.bf16.mxu0 0
      %1741 = vmatmul.mubr.bf16.gmra.mxu0 %v1618
      %v1742 = vpop.f32.mrf.mxu0
      %v1743 = vadd.f32 %v1626, %v1742
      %v1744 = vpop.f32.mrf.mxu0
      %v1745 = vpop.f32.mrf.mxu0
      %v1746 = vadd.f32 %v1626, %v1745
      %v1747 = vpop.f32.mrf.mxu0
      %1748 = vmatprep.mubr.bf16.mxu0 0
      %1749 = vmatmul.mubr.bf16.gmra.mxu0 %v1619
      %v1750 = vpop.f32.mrf.mxu0
      %v1751 = vadd.f32 %v1626, %v1750
      %v1752 = vpop.f32.mrf.mxu0
      %v1753 = vpop.f32.mrf.mxu0
      %v1754 = vadd.f32 %v1626, %v1753
      %v1755 = vpop.f32.mrf.mxu0
      %1756 = vmatprep.mubr.bf16.mxu0 0
      %1757 = vmatmul.mubr.bf16.gmra.mxu0 %v1620
      %v1758 = vpop.f32.mrf.mxu0
      %v1759 = vadd.f32 %v1626, %v1758
      %v1760 = vpop.f32.mrf.mxu0
      %v1761 = vpop.f32.mrf.mxu0
      %v1762 = vadd.f32 %v1626, %v1761
      %v1763 = vpop.f32.mrf.mxu0
      %1764 = vmatprep.mubr.bf16.mxu0 0
      %1765 = vmatmul.mubr.bf16.gmra.mxu0 %v1621
      %v1766 = vpop.f32.mrf.mxu0
      %v1767 = vadd.f32 %v1626, %v1766
      %v1768 = vpop.f32.mrf.mxu0
      %v1769 = vpop.f32.mrf.mxu0
      %v1770 = vadd.f32 %v1626, %v1769
      %v1771 = vpop.f32.mrf.mxu0
      %1772 = vdwg.mxu0
      %1773 = vst.msk [vmem:[%s496] sm:$0xff] %vm562, %v1711
      %1774 = vst.msk [vmem:[%s496 + $0x8] sm:$0xff] %vm562, %v1714
      %1775 = vst.msk [vmem:[%s496 + $0x10] sm:$0xff] %vm562, %v1719
      %1776 = vst.msk [vmem:[%s496 + $0x18] sm:$0xff] %vm562, %v1722
      %1777 = vst.msk [vmem:[%s496 + $0x20] sm:$0xff] %vm562, %v1727
      %1778 = vst.msk [vmem:[%s496 + $0x28] sm:$0xff] %vm562, %v1730
      %1779 = vst.msk [vmem:[%s496 + $0x30] sm:$0xff] %vm562, %v1735
      %1780 = vst.msk [vmem:[%s496 + $0x38] sm:$0xff] %vm562, %v1738
      %1781 = vst.msk [vmem:[%s496 + $0x40] sm:$0xff] %vm562, %v1743
      %1782 = vst.msk [vmem:[%s496 + $0x48] sm:$0xff] %vm562, %v1746
      %1783 = vst.msk [vmem:[%s496 + $0x50] sm:$0xff] %vm562, %v1751
      %1784 = vst.msk [vmem:[%s496 + $0x58] sm:$0xff] %vm562, %v1754
      %1785 = vst.msk [vmem:[%s496 + $0x60] sm:$0xff] %vm562, %v1759
      %1786 = vst.msk [vmem:[%s496 + $0x68] sm:$0xff] %vm562, %v1762
      %1787 = vst.msk [vmem:[%s496 + $0x70] sm:$0xff] %vm562, %v1767
      %1788 = vst.msk [vmem:[%s496 + $0x78] sm:$0xff] %vm562, %v1770
      %s1789 = smul.u32 16, %s26
      %p1790 = scmp.lt.s32.totalorder %s1789, 31
      %s1791 = scalar_select %p1790, %s1789, 31
      %s1792 = smul.addr %s1791, 8
      %s1793 = scalar_lea.vmem %s15, %s1792
      // Predicated region
      $region81: #{autoencoder_forward.1} parent=79 // pred_check
        %p1794 = pneg %p364
      $region82: #{autoencoder_forward.1} parent=79 // pred_check_branch
        %1796 = sbr.rel (%p1794) target = $region84
      $region83: #{autoencoder_forward.1} parent=79 // pred_region
        %s1797 = smul.u32 16, %s26
      $region84: #{autoencoder_forward.1} parent=79 // pred_fallthru
        _
    $region80: #{autoencoder_forward.1} parent=5 // pred_fallthru
      _
    %p1798 = scmp.le.s32.totalorder 2, %s21
    // Predicated region
    $region85: #{autoencoder_forward.1} parent=5 // pred_check
      %p1799 = pneg %p1798
    $region86: #{autoencoder_forward.1} parent=5 // pred_check_branch
      %1801 = sbr.rel (%p1799) target = $region88
    $region87: #{autoencoder_forward.1} parent=5 // pred_region
      %s1802 = ssub.s32 %s21, 2
      // Predicated region
      $region89: #{autoencoder_forward.1} parent=87 // pred_check
        %p1803 = pneg %p370
      $region90: #{autoencoder_forward.1} parent=87 // pred_check_branch
        %1805 = sbr.rel (%p1803) target = $region92
      $region91: #{autoencoder_forward.1} parent=87 // pred_region
        %s1806 = smul.u32 16, %s27
        %p1807 = scmp.lt.s32.totalorder %s1806, 31
        %s1808 = scalar_select %p1807, %s1806, 31
        %s1809 = smul.addr %s1808, 8
        %s1810 = scalar_lea.vmem %s15, %s1809
      $region92: #{autoencoder_forward.1} parent=87 // pred_fallthru
        _
    $region88: #{autoencoder_forward.1} parent=5 // pred_fallthru
      _
  $region6: #{autoencoder_forward.1} parent=0 // loop_footer
    %s25 = sadd.s32 1, %s21
  $region7: #{autoencoder_forward.1} parent=0 // loop_footer_branch
    %20 = sbr.rel target = $region3
  $region8: #{autoencoder_forward.1} parent=0 // loop_exit
    _

</llo_original>
